<compile_context>
chip_gen: v6e
topology: v6e:2x2x1
jax: 0.10.0
libtpu: 0.0.40
codegen_flags: <defaults>
</compile_context>

<pallas_src>
import jax
import jax.numpy as jnp
from jax.experimental import pallas as pl
from jax.experimental.pallas import tpu as pltpu

_EPS = 1e-5


# --------------------------------------------------------------------------
# Pallas kernels
# --------------------------------------------------------------------------
def _conv1_short_kernel(px_ref, m1_ref, a1_ref, b1_ref,
                        w1_ref, cb1_ref, ws_ref, cbs_ref, out_ref):
    """Tile of rows: BN1(affine)+ReLU on the x-patch, conv1 and short_conv."""
    px = px_ref[...]                                            # (tm, 9*Cin) bf16
    # BN1 + ReLU applied per patch entry; mask zeroes the padded taps so the
    # result equals im2col(relu(bn1(x))) exactly.
    z = jnp.maximum(px * a1_ref[...] + b1_ref[...], 0.0) * m1_ref[...]   # f32
    r = jnp.dot(z.astype(jnp.bfloat16), w1_ref[...],
                preferred_element_type=jnp.float32) + cb1_ref[...]       # conv1
    s = jnp.dot(px, ws_ref[...],
                preferred_element_type=jnp.float32) + cbs_ref[...]       # short_conv
    out_ref[...] = jnp.concatenate([r, s], axis=-1)             # (tm, 2*Cout) f32


def _conv2_residual_kernel(pv_ref, s_ref, w2_ref, cb2_ref,
                           as_ref, bs_ref, out_ref):
    """Tile of rows: ReLU (BN2 affine pre-applied), conv2, BN_s+ReLU, add."""
    # pv already carries the BN2 affine; padded entries are exactly 0, so
    # relu keeps them 0 (matches zero-padding of relu(bn2(conv1 out))).
    y = jnp.maximum(pv_ref[...].astype(jnp.float32), 0.0).astype(jnp.bfloat16)
    r2 = jnp.dot(y, w2_ref[...],
                 preferred_element_type=jnp.float32) + cb2_ref[...]      # conv2
    sn = jnp.maximum(s_ref[...] * as_ref[...] + bs_ref[...], 0.0)        # BN_s+ReLU
    out_ref[...] = r2 + sn


# --------------------------------------------------------------------------
# Wrapper helpers
# --------------------------------------------------------------------------
def _round_up(a, b):
    return (a + b - 1) // b * b


def _im2col(t, k, stride, pad):
    """(N,H,W,C) -> (N*H2*W2, k*k*C) patch matrix, tap-major / channel-minor."""
    N, H, W, C = t.shape
    tp = jnp.pad(t, ((0, 0), (pad, pad), (pad, pad), (0, 0)))
    H2 = (H + 2 * pad - k) // stride + 1
    W2 = (W + 2 * pad - k) // stride + 1
    taps = []
    for kh in range(k):
        for kw in range(k):
            taps.append(tp[:, kh:kh + stride * (H2 - 1) + 1:stride,
                           kw:kw + stride * (W2 - 1) + 1:stride, :])
    p = jnp.stack(taps, axis=3)                       # (N, H2, W2, 9, C)
    return p.reshape(N * H2 * W2, k * k * C), H2, W2


def _pad_rows(a, rows):
    if a.shape[0] == rows:
        return a
    return jnp.pad(a, ((0, rows - a.shape[0]), (0, 0)))


def _tap_weights_bf16(w_oihw):                        # (O,I,3,3) -> (9*I, O)
    O, I = w_oihw.shape[0], w_oihw.shape[1]
    return jnp.transpose(w_oihw, (2, 3, 1, 0)).reshape(9 * I, O).astype(jnp.bfloat16)


def _bn_affine(mean, var, gamma, beta):
    a = gamma * jax.lax.rsqrt(var + _EPS)
    return a, beta - mean * a


# --------------------------------------------------------------------------
# Forward pass
# --------------------------------------------------------------------------
def downstep_forward(x_nchw, params, *, block_rows=512):
    N, Cin, H, W = x_nchw.shape
    Cout = params["w1"].shape[0]

    x = jnp.transpose(x_nchw, (0, 2, 3, 1)).astype(jnp.float32)    # NHWC

    # ---- BN1 batch statistics (training mode, biased var), one-pass ------
    mu1 = jnp.mean(x, axis=(0, 1, 2))
    var1 = jnp.mean(jnp.square(x), axis=(0, 1, 2)) - jnp.square(mu1)
    a1, b1 = _bn_affine(mu1, var1, params["bn1_g"], params["bn1_b"])
    a1t = jnp.tile(a1, 9).reshape(1, 9 * Cin)                      # per-tap repeat
    b1t = jnp.tile(b1, 9).reshape(1, 9 * Cin)

    # ---- im2col for conv1 / short_conv (stride 2, pad 1) ------------------
    px, H2, W2 = _im2col(x, 3, 2, 1)                               # (P2, 9*Cin)
    m1, _, _ = _im2col(jnp.ones_like(x), 3, 2, 1)                  # pad-valid mask
    P2 = N * H2 * W2

    # ---- row tiling ---------------------------------------------------------
    tm = _round_up(min(block_rows, _round_up(P2, 8)), 8)
    P2p = _round_up(P2, tm)
    grid = (P2p // tm,)

    def row_spec(c):
        return pl.BlockSpec((tm, c), lambda i: (i, 0))

    def full_spec(r, c):
        return pl.BlockSpec((r, c), lambda i: (0, 0))

    cparams = pltpu.CompilerParams(
        dimension_semantics=("parallel",),        # lets v7x shard rows on 2 TCs
        vmem_limit_bytes=32 * 1024 * 1024)

    w1 = _tap_weights_bf16(params["w1"])
    ws = _tap_weights_bf16(params["ws"])
    w2 = _tap_weights_bf16(params["w2"])
    cb1 = params["b1"].reshape(1, Cout).astype(jnp.float32)
    cbs = params["bs"].reshape(1, Cout).astype(jnp.float32)
    cb2 = params["b2"].reshape(1, Cout).astype(jnp.float32)

    # ---- pass 1: BN1+ReLU + conv1 and short_conv ---------------------------
    px_b = _pad_rows(px.astype(jnp.bfloat16), P2p)
    m1_b = _pad_rows(m1.astype(jnp.bfloat16), P2p)
    pass1_cost = pl.CostEstimate(
        flops=2 * 2 * P2p * 9 * Cin * Cout,
        transcendentals=0,
        bytes_accessed=2 * P2p * 9 * Cin * 2 + P2p * 2 * Cout * 4
        + 2 * 9 * Cin * Cout * 2)

    rs = pl.pallas_call(
        _conv1_short_kernel,
        out_shape=jax.ShapeDtypeStruct((P2p, 2 * Cout), jnp.float32),
        grid=grid,
        in_specs=[row_spec(9 * Cin), row_spec(9 * Cin),
                  full_spec(1, 9 * Cin), full_spec(1, 9 * Cin),
                  full_spec(9 * Cin, Cout), full_spec(1, Cout),
                  full_spec(9 * Cin, Cout), full_spec(1, Cout)],
        out_specs=row_spec(2 * Cout),
        compiler_params=cparams,
        cost_estimate=pass1_cost,
    )(px_b, m1_b, a1t, b1t, w1, cb1, ws, cbs)

    r = rs[:P2, :Cout]            # conv1 output
    s = rs[:P2, Cout:]            # short_conv output

    # ---- cross-tile BN2 / BN_s statistics (cheap XLA reduces) --------------
    mu2 = jnp.mean(r, axis=0)
    var2 = jnp.mean(jnp.square(r), axis=0) - jnp.square(mu2)
    a2, b2 = _bn_affine(mu2, var2, params["bn2_g"], params["bn2_b"])

    mus = jnp.mean(s, axis=0)
    vars_ = jnp.mean(jnp.square(s), axis=0) - jnp.square(mus)
    a_s, b_s = _bn_affine(mus, vars_, params["bns_g"], params["bns_b"])

    # BN2 affine applied BEFORE padding/im2col so padded entries stay exactly
    # zero; the ReLU runs inside the pass-2 kernel (relu(0)=0).
    v = r * a2 + b2
    pv, _, _ = _im2col(v.reshape(N, H2, W2, Cout), 3, 1, 1)        # (P2, 9*Cout)

    # ---- pass 2: conv2 + shortcut BN+ReLU + residual add -------------------
    pv_b = _pad_rows(pv.astype(jnp.bfloat16), P2p)
    s_b = _pad_rows(s, P2p)
    pass2_cost = pl.CostEstimate(
        flops=2 * P2p * 9 * Cout * Cout,
        transcendentals=0,
        bytes_accessed=P2p * 9 * Cout * 2 + 2 * P2p * Cout * 4
        + 9 * Cout * Cout * 2)

    out_flat = pl.pallas_call(
        _conv2_residual_kernel,
        out_shape=jax.ShapeDtypeStruct((P2p, Cout), jnp.float32),
        grid=grid,
        in_specs=[row_spec(9 * Cout), row_spec(Cout),
                  full_spec(9 * Cout, Cout), full_spec(1, Cout),
                  full_spec(1, Cout), full_spec(1, Cout)],
        out_specs=row_spec(Cout),
        compiler_params=cparams,
        cost_estimate=pass2_cost,
    )(pv_b, s_b, w2, cb2, a_s.reshape(1, Cout), b_s.reshape(1, Cout))

    out = out_flat[:P2].reshape(N, H2, W2, Cout)
    return jnp.transpose(out, (0, 3, 1, 2))                        # NCHW


# --------------------------------------------------------------------------
# Deterministic params + pure-JAX reference
# --------------------------------------------------------------------------
def init_params(key, inC, outC):
    ks = jax.random.split(key, 12)
    conv_w = lambda k, o, i: jax.random.normal(k, (o, i, 3, 3), jnp.float32) * 0.2
    vec = lambda k, c: jax.random.normal(k, (c,), jnp.float32) * 0.1
    return {
        "w1": conv_w(ks[0], outC, inC), "b1": vec(ks[1], outC),
        "w2": conv_w(ks[2], outC, outC), "b2": vec(ks[3], outC),
        "ws": conv_w(ks[4], outC, inC), "bs": vec(ks[5], outC),
        "bn1_g": 1.0 + vec(ks[6], inC), "bn1_b": vec(ks[7], inC),
        "bn2_g": 1.0 + vec(ks[8], outC), "bn2_b": vec(ks[9], outC),
        "bns_g": 1.0 + vec(ks[10], outC), "bns_b": vec(ks[11], outC),
    }


def reference_forward(x, p):
    def bn_relu(t, g, b):
        mu = t.mean(axis=(0, 2, 3), keepdims=True)
        var = ((t - mu) ** 2).mean(axis=(0, 2, 3), keepdims=True)
        t = (t - mu) / jnp.sqrt(var + _EPS) * g.reshape(1, -1, 1, 1) + b.reshape(1, -1, 1, 1)
        return jnp.maximum(t, 0.0)

    def conv(t, w, b, stride):
        y = jax.lax.conv_general_dilated(
            t, w, (stride, stride), ((1, 1), (1, 1)),
            dimension_numbers=("NCHW", "OIHW", "NCHW"))
        return y + b.reshape(1, -1, 1, 1)

    r = bn_relu(x, p["bn1_g"], p["bn1_b"])
    r = conv(r, p["w1"], p["b1"], 2)
    r = bn_relu(r, p["bn2_g"], p["bn2_b"])
    r = conv(r, p["w2"], p["b2"], 1)
    s = conv(x, p["ws"], p["bs"], 2)
    s = bn_relu(s, p["bns_g"], p["bns_b"])
    return r + s


if __name__ == "__main__":
    key = jax.random.PRNGKey(0)
    kx, kp = jax.random.split(key)
    N, inC, outC, H, W = 2, 4, 8, 16, 16
    x = jax.random.normal(kx, (N, inC, H, W), jnp.float32)
    params = init_params(kp, inC, outC)

    # block_rows=64 -> a real multi-tile row grid even at this toy size.
    fwd = jax.jit(lambda xx, pp: downstep_forward(xx, pp, block_rows=64))
    out = jax.block_until_ready(fwd(x, params))
    assert out.shape == (N, outC, H // 2, W // 2), out.shape

    ref = reference_forward(x, params)
    err = float(jnp.max(jnp.abs(out - ref)))
    # Tolerance reflects bf16 MXU operands (f32 accumulation) vs an f32 reference.
    assert err < 6e-2, f"max abs error {err}"
    print("KERNEL_OK")
</pallas_src>

<mosaic_0001>
module attributes {stable_mosaic.version = 11 : i64} {
  func.func @_conv1_short_kernel(%arg0: i32, %arg1: memref<64x36xbf16, #tpu.memory_space<vmem>>, %arg2: memref<64x36xbf16, #tpu.memory_space<vmem>>, %arg3: memref<1x36xf32, #tpu.memory_space<vmem>>, %arg4: memref<1x36xf32, #tpu.memory_space<vmem>>, %arg5: memref<36x8xbf16, #tpu.memory_space<vmem>>, %arg6: memref<1x8xf32, #tpu.memory_space<vmem>>, %arg7: memref<36x8xbf16, #tpu.memory_space<vmem>>, %arg8: memref<1x8xf32, #tpu.memory_space<vmem>>, %arg9: memref<64x16xf32, #tpu.memory_space<vmem>>) attributes {dimension_semantics = [#tpu.dimension_semantics<parallel>], iteration_bounds = array<i64: 2>, scalar_prefetch = 0 : i64, scratch_operands = 0 : i64, tpu.core_type = #tpu.core_type<tc>, window_params = [{transform_indices = @transform_0, window_bounds = array<i64: 64, 36>}, {transform_indices = @transform_1, window_bounds = array<i64: 64, 36>}, {pipeline_mode = #tpu.pipeline_mode<synchronous>, transform_indices = @transform_2, window_bounds = array<i64: 1, 36>}, {pipeline_mode = #tpu.pipeline_mode<synchronous>, transform_indices = @transform_3, window_bounds = array<i64: 1, 36>}, {pipeline_mode = #tpu.pipeline_mode<synchronous>, transform_indices = @transform_4, window_bounds = array<i64: 36, 8>}, {pipeline_mode = #tpu.pipeline_mode<synchronous>, transform_indices = @transform_5, window_bounds = array<i64: 1, 8>}, {pipeline_mode = #tpu.pipeline_mode<synchronous>, transform_indices = @transform_6, window_bounds = array<i64: 36, 8>}, {pipeline_mode = #tpu.pipeline_mode<synchronous>, transform_indices = @transform_7, window_bounds = array<i64: 1, 8>}, {transform_indices = @transform_8, window_bounds = array<i64: 64, 16>}]} {
    %c0 = arith.constant 0 : index
    %c0_0 = arith.constant 0 : index
    %0 = vector.load %arg1[%c0, %c0_0] : memref<64x36xbf16, #tpu.memory_space<vmem>>, vector<64x36xbf16>
    %c0_1 = arith.constant 0 : index
    %c0_2 = arith.constant 0 : index
    %1 = vector.load %arg3[%c0_1, %c0_2] : memref<1x36xf32, #tpu.memory_space<vmem>>, vector<1x36xf32>
    %2 = arith.extf %0 : vector<64x36xbf16> to vector<64x36xf32>
    %3 = vector.broadcast %1 : vector<1x36xf32> to vector<64x36xf32>
    %4 = arith.mulf %2, %3 : vector<64x36xf32>
    %c0_3 = arith.constant 0 : index
    %c0_4 = arith.constant 0 : index
    %5 = vector.load %arg4[%c0_3, %c0_4] : memref<1x36xf32, #tpu.memory_space<vmem>>, vector<1x36xf32>
    %6 = vector.broadcast %5 : vector<1x36xf32> to vector<64x36xf32>
    %7 = arith.addf %4, %6 : vector<64x36xf32>
    %cst = arith.constant 0.000000e+00 : f32
    %8 = vector.broadcast %cst : f32 to vector<64x36xf32>
    %9 = arith.maximumf %7, %8 : vector<64x36xf32>
    %c0_5 = arith.constant 0 : index
    %c0_6 = arith.constant 0 : index
    %10 = vector.load %arg2[%c0_5, %c0_6] : memref<64x36xbf16, #tpu.memory_space<vmem>>, vector<64x36xbf16>
    %11 = arith.extf %10 : vector<64x36xbf16> to vector<64x36xf32>
    %12 = arith.mulf %9, %11 : vector<64x36xf32>
    %13 = arith.truncf %12 : vector<64x36xf32> to vector<64x36xbf16>
    %c0_7 = arith.constant 0 : index
    %c0_8 = arith.constant 0 : index
    %14 = vector.load %arg5[%c0_7, %c0_8] : memref<36x8xbf16, #tpu.memory_space<vmem>>, vector<36x8xbf16>
    %cst_9 = arith.constant dense<0.000000e+00> : vector<64x8xf32>
    %15 = tpu.matmul %13, %14, %cst_9 {dimension_numbers = #tpu.dot_dimension_numbers<[1], [0], [0], [1], [0, 0, 1, 1], [], []>} : vector<64x36xbf16>, vector<36x8xbf16>, vector<64x8xf32> -> vector<64x8xf32>
    %c0_10 = arith.constant 0 : index
    %c0_11 = arith.constant 0 : index
    %16 = vector.load %arg6[%c0_10, %c0_11] : memref<1x8xf32, #tpu.memory_space<vmem>>, vector<1x8xf32>
    %17 = vector.broadcast %16 : vector<1x8xf32> to vector<64x8xf32>
    %18 = arith.addf %15, %17 : vector<64x8xf32>
    %c0_12 = arith.constant 0 : index
    %c0_13 = arith.constant 0 : index
    %19 = vector.load %arg7[%c0_12, %c0_13] : memref<36x8xbf16, #tpu.memory_space<vmem>>, vector<36x8xbf16>
    %cst_14 = arith.constant dense<0.000000e+00> : vector<64x8xf32>
    %20 = tpu.matmul %0, %19, %cst_14 {dimension_numbers = #tpu.dot_dimension_numbers<[1], [0], [0], [1], [0, 0, 1, 1], [], []>} : vector<64x36xbf16>, vector<36x8xbf16>, vector<64x8xf32> -> vector<64x8xf32>
    %c0_15 = arith.constant 0 : index
    %c0_16 = arith.constant 0 : index
    %21 = vector.load %arg8[%c0_15, %c0_16] : memref<1x8xf32, #tpu.memory_space<vmem>>, vector<1x8xf32>
    %22 = vector.broadcast %21 : vector<1x8xf32> to vector<64x8xf32>
    %23 = arith.addf %20, %22 : vector<64x8xf32>
    %24 = tpu.concatenate %18, %23 in 1 : vector<64x8xf32>, vector<64x8xf32> -> vector<64x16xf32>
    %c0_17 = arith.constant 0 : index
    %c0_18 = arith.constant 0 : index
    %25 = vector.load %arg9[%c0_17, %c0_18] : memref<64x16xf32, #tpu.memory_space<vmem>>, vector<64x16xf32>
    tpu.vector_store %arg9[%c0_17, %c0_18], %24 {strides = array<i32>} : memref<64x16xf32, #tpu.memory_space<vmem>>, vector<64x16xf32>,
    return
  }
  func.func @transform_0(%arg0: i32) -> (i32, i32) {
    %c0_i32 = arith.constant 0 : i32
    %c0_i32_0 = arith.constant 0 : i32
    return %arg0, %c0_i32 : i32, i32
  }
  func.func @transform_1(%arg0: i32) -> (i32, i32) {
    %c0_i32 = arith.constant 0 : i32
    %c0_i32_0 = arith.constant 0 : i32
    return %arg0, %c0_i32 : i32, i32
  }
  func.func @transform_2(%arg0: i32) -> (i32, i32) {
    %c0_i32 = arith.constant 0 : i32
    %c0_i32_0 = arith.constant 0 : i32
    %c0_i32_1 = arith.constant 0 : i32
    return %c0_i32, %c0_i32_0 : i32, i32
  }
  func.func @transform_3(%arg0: i32) -> (i32, i32) {
    %c0_i32 = arith.constant 0 : i32
    %c0_i32_0 = arith.constant 0 : i32
    %c0_i32_1 = arith.constant 0 : i32
    return %c0_i32, %c0_i32_0 : i32, i32
  }
  func.func @transform_4(%arg0: i32) -> (i32, i32) {
    %c0_i32 = arith.constant 0 : i32
    %c0_i32_0 = arith.constant 0 : i32
    %c0_i32_1 = arith.constant 0 : i32
    return %c0_i32, %c0_i32_0 : i32, i32
  }
  func.func @transform_5(%arg0: i32) -> (i32, i32) {
    %c0_i32 = arith.constant 0 : i32
    %c0_i32_0 = arith.constant 0 : i32
    %c0_i32_1 = arith.constant 0 : i32
    return %c0_i32, %c0_i32_0 : i32, i32
  }
  func.func @transform_6(%arg0: i32) -> (i32, i32) {
    %c0_i32 = arith.constant 0 : i32
    %c0_i32_0 = arith.constant 0 : i32
    %c0_i32_1 = arith.constant 0 : i32
    return %c0_i32, %c0_i32_0 : i32, i32
  }
  func.func @transform_7(%arg0: i32) -> (i32, i32) {
    %c0_i32 = arith.constant 0 : i32
    %c0_i32_0 = arith.constant 0 : i32
    %c0_i32_1 = arith.constant 0 : i32
    return %c0_i32, %c0_i32_0 : i32, i32
  }
  func.func @transform_8(%arg0: i32) -> (i32, i32) {
    %c0_i32 = arith.constant 0 : i32
    %c0_i32_0 = arith.constant 0 : i32
    return %arg0, %c0_i32 : i32, i32
  }
}

module attributes {stable_mosaic.version = 11 : i64} {
  func.func @_conv2_residual_kernel(%arg0: i32, %arg1: memref<64x72xbf16, #tpu.memory_space<vmem>>, %arg2: memref<64x8xf32, #tpu.memory_space<vmem>>, %arg3: memref<72x8xbf16, #tpu.memory_space<vmem>>, %arg4: memref<1x8xf32, #tpu.memory_space<vmem>>, %arg5: memref<1x8xf32, #tpu.memory_space<vmem>>, %arg6: memref<1x8xf32, #tpu.memory_space<vmem>>, %arg7: memref<64x8xf32, #tpu.memory_space<vmem>>) attributes {dimension_semantics = [#tpu.dimension_semantics<parallel>], iteration_bounds = array<i64: 2>, scalar_prefetch = 0 : i64, scratch_operands = 0 : i64, tpu.core_type = #tpu.core_type<tc>, window_params = [{transform_indices = @transform_0, window_bounds = array<i64: 64, 72>}, {transform_indices = @transform_1, window_bounds = array<i64: 64, 8>}, {pipeline_mode = #tpu.pipeline_mode<synchronous>, transform_indices = @transform_2, window_bounds = array<i64: 72, 8>}, {pipeline_mode = #tpu.pipeline_mode<synchronous>, transform_indices = @transform_3, window_bounds = array<i64: 1, 8>}, {pipeline_mode = #tpu.pipeline_mode<synchronous>, transform_indices = @transform_4, window_bounds = array<i64: 1, 8>}, {pipeline_mode = #tpu.pipeline_mode<synchronous>, transform_indices = @transform_5, window_bounds = array<i64: 1, 8>}, {transform_indices = @transform_6, window_bounds = array<i64: 64, 8>}]} {
    %c0 = arith.constant 0 : index
    %c0_0 = arith.constant 0 : index
    %0 = vector.load %arg1[%c0, %c0_0] : memref<64x72xbf16, #tpu.memory_space<vmem>>, vector<64x72xbf16>
    %1 = arith.extf %0 : vector<64x72xbf16> to vector<64x72xf32>
    %cst = arith.constant 0.000000e+00 : f32
    %2 = vector.broadcast %cst : f32 to vector<64x72xf32>
    %3 = arith.maximumf %1, %2 : vector<64x72xf32>
    %4 = arith.truncf %3 : vector<64x72xf32> to vector<64x72xbf16>
    %c0_1 = arith.constant 0 : index
    %c0_2 = arith.constant 0 : index
    %5 = vector.load %arg3[%c0_1, %c0_2] : memref<72x8xbf16, #tpu.memory_space<vmem>>, vector<72x8xbf16>
    %cst_3 = arith.constant dense<0.000000e+00> : vector<64x8xf32>
    %6 = tpu.matmul %4, %5, %cst_3 {dimension_numbers = #tpu.dot_dimension_numbers<[1], [0], [0], [1], [0, 0, 1, 1], [], []>} : vector<64x72xbf16>, vector<72x8xbf16>, vector<64x8xf32> -> vector<64x8xf32>
    %c0_4 = arith.constant 0 : index
    %c0_5 = arith.constant 0 : index
    %7 = vector.load %arg4[%c0_4, %c0_5] : memref<1x8xf32, #tpu.memory_space<vmem>>, vector<1x8xf32>
    %8 = vector.broadcast %7 : vector<1x8xf32> to vector<64x8xf32>
    %9 = arith.addf %6, %8 : vector<64x8xf32>
    %c0_6 = arith.constant 0 : index
    %c0_7 = arith.constant 0 : index
    %10 = vector.load %arg2[%c0_6, %c0_7] : memref<64x8xf32, #tpu.memory_space<vmem>>, vector<64x8xf32>
    %c0_8 = arith.constant 0 : index
    %c0_9 = arith.constant 0 : index
    %11 = vector.load %arg5[%c0_8, %c0_9] : memref<1x8xf32, #tpu.memory_space<vmem>>, vector<1x8xf32>
    %12 = vector.broadcast %11 : vector<1x8xf32> to vector<64x8xf32>
    %13 = arith.mulf %10, %12 : vector<64x8xf32>
    %c0_10 = arith.constant 0 : index
    %c0_11 = arith.constant 0 : index
    %14 = vector.load %arg6[%c0_10, %c0_11] : memref<1x8xf32, #tpu.memory_space<vmem>>, vector<1x8xf32>
    %15 = vector.broadcast %14 : vector<1x8xf32> to vector<64x8xf32>
    %16 = arith.addf %13, %15 : vector<64x8xf32>
    %cst_12 = arith.constant 0.000000e+00 : f32
    %17 = vector.broadcast %cst_12 : f32 to vector<64x8xf32>
    %18 = arith.maximumf %16, %17 : vector<64x8xf32>
    %19 = arith.addf %9, %18 : vector<64x8xf32>
    %c0_13 = arith.constant 0 : index
    %c0_14 = arith.constant 0 : index
    %20 = vector.load %arg7[%c0_13, %c0_14] : memref<64x8xf32, #tpu.memory_space<vmem>>, vector<64x8xf32>
    tpu.vector_store %arg7[%c0_13, %c0_14], %19 {strides = array<i32>} : memref<64x8xf32, #tpu.memory_space<vmem>>, vector<64x8xf32>,
    return
  }
  func.func @transform_0(%arg0: i32) -> (i32, i32) {
    %c0_i32 = arith.constant 0 : i32
    %c0_i32_0 = arith.constant 0 : i32
    return %arg0, %c0_i32 : i32, i32
  }
  func.func @transform_1(%arg0: i32) -> (i32, i32) {
    %c0_i32 = arith.constant 0 : i32
    %c0_i32_0 = arith.constant 0 : i32
    return %arg0, %c0_i32 : i32, i32
  }
  func.func @transform_2(%arg0: i32) -> (i32, i32) {
    %c0_i32 = arith.constant 0 : i32
    %c0_i32_0 = arith.constant 0 : i32
    %c0_i32_1 = arith.constant 0 : i32
    return %c0_i32, %c0_i32_0 : i32, i32
  }
  func.func @transform_3(%arg0: i32) -> (i32, i32) {
    %c0_i32 = arith.constant 0 : i32
    %c0_i32_0 = arith.constant 0 : i32
    %c0_i32_1 = arith.constant 0 : i32
    return %c0_i32, %c0_i32_0 : i32, i32
  }
  func.func @transform_4(%arg0: i32) -> (i32, i32) {
    %c0_i32 = arith.constant 0 : i32
    %c0_i32_0 = arith.constant 0 : i32
    %c0_i32_1 = arith.constant 0 : i32
    return %c0_i32, %c0_i32_0 : i32, i32
  }
  func.func @transform_5(%arg0: i32) -> (i32, i32) {
    %c0_i32 = arith.constant 0 : i32
    %c0_i32_0 = arith.constant 0 : i32
    %c0_i32_1 = arith.constant 0 : i32
    return %c0_i32, %c0_i32_0 : i32, i32
  }
  func.func @transform_6(%arg0: i32) -> (i32, i32) {
    %c0_i32 = arith.constant 0 : i32
    %c0_i32_0 = arith.constant 0 : i32
    return %arg0, %c0_i32 : i32, i32
  }
}

</mosaic_0001>

<llo_original>
// kernel: tile.13
$region0: #{tile.13}
  #allocation0 [shape = 's32[1]{0}', space=sflag, size = 0x4, scoped, tag = 'scoped memory for tile.13']
  %s0 = inlined_call_operand.vmem [shape: f32[4], index: 0, kind: input, shape index: {}]
  %s1 = inlined_call_operand.vmem [shape: f32[9,4], index: 1, kind: output, shape index: {}]
  // Predicated region
  $region2: #{tile.13} parent=0 // pred_check
    _
  $region3: #{tile.13} parent=0 // pred_check_branch
    %3 = sbr.rel (0) target = $region5
  $region4: #{tile.13} parent=0 // pred_region
    _
  $region5: #{tile.13} parent=0 // pred_fallthru
    _
  %v4 = vld [vmem:[%s0] ss:$0 sm:$0xff]
  %5 = vst [vmem:[%s1] sm:$0xff] %v4
  %s6 = scalar_lea.vmem %s1, 8
  %7 = vst [vmem:[%s6] sm:$0xff] %v4

// kernel: tile.14
$region0: #{tile.14}
  %s0 = inlined_call_operand.vmem [shape: f32[9,4], index: 0, kind: input, shape index: {}]
  %s1 = inlined_call_operand.vmem [shape: f32[1,36], index: 1, kind: output, shape index: {}]
  $region1: #{tile.14} parent=0
    #allocation0 [shape = 'u8[4096]{0}', space=vmem, size = 0x1000, scoped, tag = 'scoped mem for output reshape']
    %v2 = vld [vmem:[%s0] sm:$0x1]
    %vm3 = vcmask 31744
    %4 = vst.msk [vmem:[#allocation0] sm:$0x1] %vm3, %v2
    %s5 = scalar_lea.vmem %s0, 8
    %v6 = vld [vmem:[%s5] sm:$0x1]
    %7 = vrot.lane.b32.xlu0 %v6, 32
    %v8 = vpop.permute.xlu0 %7
    %vm9 = vcmask 294144
    %10 = vst.msk [vmem:[#allocation0] sm:$0x1] %vm9, %v8
    %s11 = scalar_lea.vmem %s0, 7
    %v12 = vld [vmem:[%s11] sm:$0x1]
    %13 = vrot.lane.b32.xlu0 %v12, 28
    %v14 = vpop.permute.xlu0 %13
    %vm15 = vcmask 261344
    %16 = vst.msk [vmem:[#allocation0] sm:$0x1] %vm15, %v14
    %s17 = scalar_lea.vmem %s0, 6
    %v18 = vld [vmem:[%s17] sm:$0x1]
    %19 = vrot.lane.b32.xlu0 %v18, 24
    %v20 = vpop.permute.xlu0 %19
    %vm21 = vcmask 228544
    %22 = vst.msk [vmem:[#allocation0] sm:$0x1] %vm21, %v20
    %s23 = scalar_lea.vmem %s0, 5
    %v24 = vld [vmem:[%s23] sm:$0x1]
    %25 = vrot.lane.b32.xlu0 %v24, 20
    %v26 = vpop.permute.xlu0 %25
    %vm27 = vcmask 195744
    %28 = vst.msk [vmem:[#allocation0] sm:$0x1] %vm27, %v26
    %s29 = scalar_lea.vmem %s0, 4
    %v30 = vld [vmem:[%s29] sm:$0x1]
    %31 = vrot.lane.b32.xlu0 %v30, 16
    %v32 = vpop.permute.xlu0 %31
    %vm33 = vcmask 162944
    %34 = vst.msk [vmem:[#allocation0] sm:$0x1] %vm33, %v32
    %s35 = scalar_lea.vmem %s0, 3
    %v36 = vld [vmem:[%s35] sm:$0x1]
    %37 = vrot.lane.b32.xlu0 %v36, 12
    %v38 = vpop.permute.xlu0 %37
    %vm39 = vcmask 130144
    %40 = vst.msk [vmem:[#allocation0] sm:$0x1] %vm39, %v38
    %s41 = scalar_lea.vmem %s0, 2
    %v42 = vld [vmem:[%s41] sm:$0x1]
    %43 = vrot.lane.b32.xlu0 %v42, 8
    %v44 = vpop.permute.xlu0 %43
    %vm45 = vcmask 97344
    %46 = vst.msk [vmem:[#allocation0] sm:$0x1] %vm45, %v44
    %s47 = scalar_lea.vmem %s0, 1
    %v48 = vld [vmem:[%s47] sm:$0x1]
    %49 = vrot.lane.b32.xlu0 %v48, 4
    %v50 = vpop.permute.xlu0 %49
    %vm51 = vcmask 64544
    %52 = vst.msk [vmem:[#allocation0] sm:$0x1] %vm51, %v50
    %s54 = sshll.u32 1, 1
    %s55 = ssub.s32 %s54, 1
    %v57 = vld [vmem:[#allocation0] sm:%s55]
    %s58 = sshll.u32 1, 1
    %s59 = ssub.s32 %s58, 1
    %60 = vst [vmem:[%s1] sm:%s59] %v57

// kernel: _lambda_.2
$region0: #{_lambda_.2}
  #allocation0 [shape = 'u32[]', space=smem, size = 0x4, offset = 0x4, fixed_abs, tag = 'smem constant byte address 0x4 - core index']
  #allocation1 [shape = 'u32[144,128]{1,0:T(1,128)}', space=vmem, size = 0x12000, scoped, tag = 'internal scratch']
  %s0 = inlined_call_operand.vmem [shape: bf16[128,36], index: 0, kind: input, shape index: {}]
  %s1 = inlined_call_operand.vmem [shape: bf16[128,36], index: 1, kind: input, shape index: {}]
  %s2 = inlined_call_operand.vmem [shape: f32[1,36], index: 2, kind: input, shape index: {}]
  %s3 = inlined_call_operand.vmem [shape: f32[1,36], index: 3, kind: input, shape index: {}]
  %s4 = inlined_call_operand.vmem [shape: bf16[36,8], index: 4, kind: input, shape index: {}]
  %s5 = inlined_call_operand.vmem [shape: f32[1,8], index: 5, kind: input, shape index: {}]
  %s6 = inlined_call_operand.vmem [shape: bf16[36,8], index: 6, kind: input, shape index: {}]
  %s7 = inlined_call_operand.vmem [shape: f32[1,8], index: 7, kind: input, shape index: {}]
  %s8 = inlined_call_operand.vmem [shape: f32[128,16], index: 8, kind: output, shape index: {}]
  %s9 = sld [smem:[#allocation0]]
  $region65: #{_lambda_.2} parent=0
    _
  %s11 = ssub.s32 1, %s9
  %s12 = scalar_select 0, %s11, %s9
  loop: start=0, step=1, limit=4
  $region2: #{_lambda_.2} parent=0 // loop_pre_header
    _
  $region3: #{_lambda_.2} parent=0 // loop_header
    %s14 = sphi 0, %s18
    %p15 = scmp.ge.s32.totalorder %s14, 4
    %s24 = sphi 0, %s26
    %s27 = sphi 0, %s24
    %s28 = sphi 0, %s27
    %s44 = sphi 0, %s28
    %s50 = sphi 0, %s52
    %s53 = sphi 0, %s50
    %s54 = sphi 0, %s53
    %s70 = sphi 0, %s54
    %s74 = sphi 0, %s74
    %s76 = sphi 0, %s74
    %s77 = sphi 0, %s76
    %s91 = sphi 0, %s77
    %s95 = sphi 0, %s95
    %s97 = sphi 0, %s95
    %s98 = sphi 0, %s97
    %s112 = sphi 0, %s98
    %s116 = sphi 0, %s116
    %s118 = sphi 0, %s116
    %s119 = sphi 0, %s118
    %s133 = sphi 0, %s119
    %s137 = sphi 0, %s137
    %s139 = sphi 0, %s137
    %s140 = sphi 0, %s139
    %s154 = sphi 0, %s140
    %s158 = sphi 0, %s158
    %s160 = sphi 0, %s158
    %s161 = sphi 0, %s160
    %s175 = sphi 0, %s161
    %s179 = sphi 0, %s179
    %s181 = sphi 0, %s179
    %s182 = sphi 0, %s181
    %s196 = sphi 0, %s182
    %s202 = sphi 0, %s204
    %s205 = sphi 0, %s202
    %s206 = sphi 0, %s205
    %s222 = sphi 0, %s206
  $region4: #{_lambda_.2} parent=0 // loop_header_branch
    %17 = sbr.rel (%p15) target = $region8
  $region5: #{_lambda_.2} parent=0 // loop_body
    %s19 = ssub.s32 %s14, 1
    %s20 = ssub.s32 %s14, 2
    %s21 = sadd.s32 %s14, 1
    %s22 = ssub.s32 %s14, %s21
    %p23 = scmp.eq.s32.totalorder %s22, 0
    %s25 = sadd.s32 %s24, 1
    %s26 = scalar_select %p23, %s24, %s25
    %p29 = pneg %p23
    %p30 = scmp.eq.s32.totalorder %s14, 1
    %p31 = por %p29, %p30
    %p32 = scmp.ne.s32.totalorder %s24, %s27
    %p33 = scmp.eq.s32.totalorder %s14, 0
    %p34 = por %p32, %p33
    %p35 = scmp.ne.s32.totalorder %s24, %s27
    %p36 = scmp.eq.s32.totalorder %s19, 1
    %p37 = por %p35, %p36
    %p38 = scmp.ne.s32.totalorder %s27, %s28
    %p39 = scmp.eq.s32.totalorder %s19, 0
    %p40 = por %p38, %p39
    %p41 = scmp.ne.s32.totalorder %s27, %s28
    %p42 = scmp.eq.s32.totalorder %s20, 1
    %p43 = por %p41, %p42
    %p45 = scmp.ne.s32.totalorder %s28, %s44
    %p46 = scmp.eq.s32.totalorder %s20, 0
    %p47 = por %p45, %p46
    %s48 = ssub.s32 %s14, %s21
    %p49 = scmp.eq.s32.totalorder %s48, 0
    %s51 = sadd.s32 %s50, 1
    %s52 = scalar_select %p49, %s50, %s51
    %p55 = pneg %p49
    %p56 = scmp.eq.s32.totalorder %s14, 1
    %p57 = por %p55, %p56
    %p58 = scmp.ne.s32.totalorder %s50, %s53
    %p59 = scmp.eq.s32.totalorder %s14, 0
    %p60 = por %p58, %p59
    %p61 = scmp.ne.s32.totalorder %s50, %s53
    %p62 = scmp.eq.s32.totalorder %s19, 1
    %p63 = por %p61, %p62
    %p64 = scmp.ne.s32.totalorder %s53, %s54
    %p65 = scmp.eq.s32.totalorder %s19, 0
    %p66 = por %p64, %p65
    %p67 = scmp.ne.s32.totalorder %s53, %s54
    %p68 = scmp.eq.s32.totalorder %s20, 1
    %p69 = por %p67, %p68
    %p71 = scmp.ne.s32.totalorder %s54, %s70
    %p72 = scmp.eq.s32.totalorder %s20, 0
    %p73 = por %p71, %p72
    %s75 = sadd.s32 %s74, 1
    %p78 = scmp.eq.s32.totalorder %s14, 1
    %p79 = scmp.ne.s32.totalorder %s74, %s76
    %p80 = scmp.eq.s32.totalorder %s14, 0
    %p81 = por %p79, %p80
    %p82 = scmp.ne.s32.totalorder %s74, %s76
    %p83 = scmp.eq.s32.totalorder %s19, 1
    %p84 = por %p82, %p83
    %p85 = scmp.ne.s32.totalorder %s76, %s77
    %p86 = scmp.eq.s32.totalorder %s19, 0
    %p87 = por %p85, %p86
    %p88 = scmp.ne.s32.totalorder %s76, %s77
    %p89 = scmp.eq.s32.totalorder %s20, 1
    %p90 = por %p88, %p89
    %p92 = scmp.ne.s32.totalorder %s77, %s91
    %p93 = scmp.eq.s32.totalorder %s20, 0
    %p94 = por %p92, %p93
    %s96 = sadd.s32 %s95, 1
    %p99 = scmp.eq.s32.totalorder %s14, 1
    %p100 = scmp.ne.s32.totalorder %s95, %s97
    %p101 = scmp.eq.s32.totalorder %s14, 0
    %p102 = por %p100, %p101
    %p103 = scmp.ne.s32.totalorder %s95, %s97
    %p104 = scmp.eq.s32.totalorder %s19, 1
    %p105 = por %p103, %p104
    %p106 = scmp.ne.s32.totalorder %s97, %s98
    %p107 = scmp.eq.s32.totalorder %s19, 0
    %p108 = por %p106, %p107
    %p109 = scmp.ne.s32.totalorder %s97, %s98
    %p110 = scmp.eq.s32.totalorder %s20, 1
    %p111 = por %p109, %p110
    %p113 = scmp.ne.s32.totalorder %s98, %s112
    %p114 = scmp.eq.s32.totalorder %s20, 0
    %p115 = por %p113, %p114
    %s117 = sadd.s32 %s116, 1
    %p120 = scmp.eq.s32.totalorder %s14, 1
    %p121 = scmp.ne.s32.totalorder %s116, %s118
    %p122 = scmp.eq.s32.totalorder %s14, 0
    %p123 = por %p121, %p122
    %p124 = scmp.ne.s32.totalorder %s116, %s118
    %p125 = scmp.eq.s32.totalorder %s19, 1
    %p126 = por %p124, %p125
    %p127 = scmp.ne.s32.totalorder %s118, %s119
    %p128 = scmp.eq.s32.totalorder %s19, 0
    %p129 = por %p127, %p128
    %p130 = scmp.ne.s32.totalorder %s118, %s119
    %p131 = scmp.eq.s32.totalorder %s20, 1
    %p132 = por %p130, %p131
    %p134 = scmp.ne.s32.totalorder %s119, %s133
    %p135 = scmp.eq.s32.totalorder %s20, 0
    %p136 = por %p134, %p135
    %s138 = sadd.s32 %s137, 1
    %p141 = scmp.eq.s32.totalorder %s14, 1
    %p142 = scmp.ne.s32.totalorder %s137, %s139
    %p143 = scmp.eq.s32.totalorder %s14, 0
    %p144 = por %p142, %p143
    %p145 = scmp.ne.s32.totalorder %s137, %s139
    %p146 = scmp.eq.s32.totalorder %s19, 1
    %p147 = por %p145, %p146
    %p148 = scmp.ne.s32.totalorder %s139, %s140
    %p149 = scmp.eq.s32.totalorder %s19, 0
    %p150 = por %p148, %p149
    %p151 = scmp.ne.s32.totalorder %s139, %s140
    %p152 = scmp.eq.s32.totalorder %s20, 1
    %p153 = por %p151, %p152
    %p155 = scmp.ne.s32.totalorder %s140, %s154
    %p156 = scmp.eq.s32.totalorder %s20, 0
    %p157 = por %p155, %p156
    %s159 = sadd.s32 %s158, 1
    %p162 = scmp.eq.s32.totalorder %s14, 1
    %p163 = scmp.ne.s32.totalorder %s158, %s160
    %p164 = scmp.eq.s32.totalorder %s14, 0
    %p165 = por %p163, %p164
    %p166 = scmp.ne.s32.totalorder %s158, %s160
    %p167 = scmp.eq.s32.totalorder %s19, 1
    %p168 = por %p166, %p167
    %p169 = scmp.ne.s32.totalorder %s160, %s161
    %p170 = scmp.eq.s32.totalorder %s19, 0
    %p171 = por %p169, %p170
    %p172 = scmp.ne.s32.totalorder %s160, %s161
    %p173 = scmp.eq.s32.totalorder %s20, 1
    %p174 = por %p172, %p173
    %p176 = scmp.ne.s32.totalorder %s161, %s175
    %p177 = scmp.eq.s32.totalorder %s20, 0
    %p178 = por %p176, %p177
    %s180 = sadd.s32 %s179, 1
    %p183 = scmp.eq.s32.totalorder %s14, 1
    %p184 = scmp.ne.s32.totalorder %s179, %s181
    %p185 = scmp.eq.s32.totalorder %s14, 0
    %p186 = por %p184, %p185
    %p187 = scmp.ne.s32.totalorder %s179, %s181
    %p188 = scmp.eq.s32.totalorder %s19, 1
    %p189 = por %p187, %p188
    %p190 = scmp.ne.s32.totalorder %s181, %s182
    %p191 = scmp.eq.s32.totalorder %s19, 0
    %p192 = por %p190, %p191
    %p193 = scmp.ne.s32.totalorder %s181, %s182
    %p194 = scmp.eq.s32.totalorder %s20, 1
    %p195 = por %p193, %p194
    %p197 = scmp.ne.s32.totalorder %s182, %s196
    %p198 = scmp.eq.s32.totalorder %s20, 0
    %p199 = por %p197, %p198
    %s200 = ssub.s32 %s14, %s21
    %p201 = scmp.eq.s32.totalorder %s200, 0
    %s203 = sadd.s32 %s202, 1
    %s204 = scalar_select %p201, %s202, %s203
    %p207 = pneg %p201
    %p208 = scmp.eq.s32.totalorder %s14, 1
    %p209 = por %p207, %p208
    %p210 = scmp.ne.s32.totalorder %s202, %s205
    %p211 = scmp.eq.s32.totalorder %s14, 0
    %p212 = por %p210, %p211
    %p213 = scmp.ne.s32.totalorder %s202, %s205
    %p214 = scmp.eq.s32.totalorder %s19, 1
    %p215 = por %p213, %p214
    %p216 = scmp.ne.s32.totalorder %s205, %s206
    %p217 = scmp.eq.s32.totalorder %s19, 0
    %p218 = por %p216, %p217
    %p219 = scmp.ne.s32.totalorder %s205, %s206
    %p220 = scmp.eq.s32.totalorder %s20, 1
    %p221 = por %p219, %p220
    %p223 = scmp.ne.s32.totalorder %s206, %s222
    %p224 = scmp.eq.s32.totalorder %s20, 0
    %p225 = por %p223, %p224
    %p226 = scmp.le.s32.totalorder 1, %s14
    %p227 = scmp.lt.s32.totalorder %s14, 3
    %p228 = pnand %p226, %p227
    %p229 = pneg %p228
    // Predicated region
    $region9: #{_lambda_.2} parent=5 // pred_check
      _
    $region10: #{_lambda_.2} parent=5 // pred_check_branch
      %231 = sbr.rel (%p228) target = $region12
    $region11: #{_lambda_.2} parent=5 // pred_region
      %s232 = ssub.s32 %s14, 1
      // Predicated region
      $region13: #{_lambda_.2} parent=11 // pred_check
        %p233 = pneg %p87
      $region14: #{_lambda_.2} parent=11 // pred_check_branch
        %235 = sbr.rel (%p233) target = $region16
      $region15: #{_lambda_.2} parent=11 // pred_region
        _
      $region16: #{_lambda_.2} parent=11 // pred_fallthru
        _
      // Predicated region
      $region17: #{_lambda_.2} parent=11 // pred_check
        %p236 = pneg %p108
      $region18: #{_lambda_.2} parent=11 // pred_check_branch
        %238 = sbr.rel (%p236) target = $region20
      $region19: #{_lambda_.2} parent=11 // pred_region
        _
      $region20: #{_lambda_.2} parent=11 // pred_fallthru
        _
      // Predicated region
      $region21: #{_lambda_.2} parent=11 // pred_check
        %p239 = pneg %p129
      $region22: #{_lambda_.2} parent=11 // pred_check_branch
        %241 = sbr.rel (%p239) target = $region24
      $region23: #{_lambda_.2} parent=11 // pred_region
        _
      $region24: #{_lambda_.2} parent=11 // pred_fallthru
        _
      // Predicated region
      $region25: #{_lambda_.2} parent=11 // pred_check
        %p242 = pneg %p150
      $region26: #{_lambda_.2} parent=11 // pred_check_branch
        %244 = sbr.rel (%p242) target = $region28
      $region27: #{_lambda_.2} parent=11 // pred_region
        _
      $region28: #{_lambda_.2} parent=11 // pred_fallthru
        _
      // Predicated region
      $region29: #{_lambda_.2} parent=11 // pred_check
        %p245 = pneg %p171
      $region30: #{_lambda_.2} parent=11 // pred_check_branch
        %247 = sbr.rel (%p245) target = $region32
      $region31: #{_lambda_.2} parent=11 // pred_region
        _
      $region32: #{_lambda_.2} parent=11 // pred_fallthru
        _
      // Predicated region
      $region33: #{_lambda_.2} parent=11 // pred_check
        %p248 = pneg %p192
      $region34: #{_lambda_.2} parent=11 // pred_check_branch
        %250 = sbr.rel (%p248) target = $region36
      $region35: #{_lambda_.2} parent=11 // pred_region
        _
      $region36: #{_lambda_.2} parent=11 // pred_fallthru
        _
    $region12: #{_lambda_.2} parent=5 // pred_fallthru
      _
    %p251 = scmp.lt.s32.totalorder %s14, 2
    // Predicated region
    $region37: #{_lambda_.2} parent=5 // pred_check
      %p252 = pneg %p251
    $region38: #{_lambda_.2} parent=5 // pred_check_branch
      %254 = sbr.rel (%p252) target = $region40
    $region39: #{_lambda_.2} parent=5 // pred_region
      // Predicated region
      $region41: #{_lambda_.2} parent=39 // pred_check
        %p255 = pneg %p34
      $region42: #{_lambda_.2} parent=39 // pred_check_branch
        %257 = sbr.rel (%p255) target = $region44
      $region43: #{_lambda_.2} parent=39 // pred_region
        %s258 = smul.u32 8, %s14
        %p259 = scmp.lt.s32.totalorder %s258, 15
        %s260 = scalar_select %p259, %s258, 15
        %s261 = smul.addr %s260, 4
        %s262 = scalar_lea.vmem %s0, %s261
        %s263 = smul.u32 8, %s14
      $region44: #{_lambda_.2} parent=39 // pred_fallthru
        _
      // Predicated region
      $region45: #{_lambda_.2} parent=39 // pred_check
        %p264 = pneg %p60
      $region46: #{_lambda_.2} parent=39 // pred_check_branch
        %266 = sbr.rel (%p264) target = $region48
      $region47: #{_lambda_.2} parent=39 // pred_region
        %s267 = smul.u32 8, %s14
        %p268 = scmp.lt.s32.totalorder %s267, 15
        %s269 = scalar_select %p268, %s267, 15
        %s270 = smul.addr %s269, 4
        %s271 = scalar_lea.vmem %s1, %s270
        %s272 = smul.u32 8, %s14
      $region48: #{_lambda_.2} parent=39 // pred_fallthru
        _
    $region40: #{_lambda_.2} parent=5 // pred_fallthru
      _
    %p273 = scmp.le.s32.totalorder 1, %s14
    %p274 = scmp.lt.s32.totalorder %s14, 3
    %p275 = pnand %p273, %p274
    %p276 = pneg %p275
    // Predicated region
    $region49: #{_lambda_.2} parent=5 // pred_check
      _
    $region50: #{_lambda_.2} parent=5 // pred_check_branch
      %278 = sbr.rel (%p275) target = $region52
    $region51: #{_lambda_.2} parent=5 // pred_region
      %s279 = ssub.s32 %s14, 1
      %s280 = smul.u32 8, %s19
      %p281 = scmp.lt.s32.totalorder %s280, 15
      %s282 = scalar_select %p281, %s280, 15
      %s283 = smul.addr %s282, 4
      %s284 = scalar_lea.vmem %s0, %s283
      %p285 = pneg %p40
      %p286 = pneg %p37
      %s287 = smul.u32 8, %s19
      %p288 = scmp.lt.s32.totalorder %s287, 15
      %s289 = scalar_select %p288, %s287, 15
      %s290 = smul.addr %s289, 4
      %s291 = scalar_lea.vmem %s1, %s290
      %p292 = pneg %p66
      %p293 = pneg %p63
      %p294 = pneg %p87
      %p295 = pneg %p84
      %p296 = pneg %p108
      %p297 = pneg %p105
      %p298 = pneg %p129
      %p299 = pneg %p126
      %p300 = pneg %p150
      %p301 = pneg %p147
      %p302 = pneg %p171
      %p303 = pneg %p168
      %p304 = pneg %p192
      %p305 = pneg %p189
      %p306 = pneg %p218
      %p307 = pneg %p215
      %s308 = smul.u32 8, %s19
      %p309 = scmp.lt.s32.totalorder %s308, 15
      %s310 = scalar_select %p309, %s308, 15
      %s311 = smul.addr %s310, 8
      %s312 = scalar_lea.vmem %s8, %s311
      %s313 = smul.u32 8, %s19
      %p314 = scmp.lt.s32.totalorder %s313, 15
      %s315 = scalar_select %p314, %s313, 15
      %s316 = smul.addr %s315, 4
      %s317 = scalar_lea.vmem %s0, %s316
      %s318 = smul.u32 8, %s19
      %s319 = smul.u32 8, %s19
      %p320 = scmp.lt.s32.totalorder %s319, 15
      %s321 = scalar_select %p320, %s319, 15
      %s322 = smul.addr %s321, 4
      %s323 = scalar_lea.vmem %s1, %s322
      %s324 = smul.u32 8, %s19
      %s325 = smul.u32 8, %s19
      %p326 = scmp.lt.s32.totalorder %s325, 15
      %s327 = scalar_select %p326, %s325, 15
      %s328 = smul.addr %s327, 8
      %s329 = scalar_lea.vmem %s8, %s328
      %s330 = smul.u32 8, %s19
      %v332 = vld [vmem:[%s317] sm:$0xf]
      %v333 = vld [vmem:[%s317 + $0x4] sm:$0xf]
      %v334 = vld [vmem:[%s317 + $0x8] sm:$0xf]
      %v335 = vld [vmem:[%s317 + $0xc] sm:$0xf]
      %v336 = vld [vmem:[%s317 + $0x10] sm:$0xf]
      %v337 = vld [vmem:[%s317 + $0x14] sm:$0xf]
      %v338 = vld [vmem:[%s317 + $0x18] sm:$0xf]
      %v339 = vld [vmem:[%s317 + $0x1c] sm:$0xf]
      %v340 = vld [vmem:[%s2] sm:$0x1]
      %v341 = vunpack.c.l.bf16 %v332
      %v342 = vunpack.c.l.bf16 %v333
      %v343 = vunpack.c.l.bf16 %v334
      %v344 = vunpack.c.l.bf16 %v335
      %v345 = vunpack.c.l.bf16 %v336
      %v346 = vunpack.c.l.bf16 %v337
      %v347 = vunpack.c.l.bf16 %v338
      %v348 = vunpack.c.l.bf16 %v339
      %v350 = vlaneseq
      %v351 = vshrl.u32 %v350, 7
      %v352 = vsub.s32 0, %v351
      %v353 = vrot.slane %v340, %v352
      %v355 = vmul.f32 %v341, %v353
      %v356 = vmul.f32 %v342, %v353
      %v357 = vmul.f32 %v343, %v353
      %v358 = vmul.f32 %v344, %v353
      %v359 = vmul.f32 %v345, %v353
      %v360 = vmul.f32 %v346, %v353
      %v361 = vmul.f32 %v347, %v353
      %v362 = vmul.f32 %v348, %v353
      %v363 = vld [vmem:[%s3] sm:$0x1]
      %v365 = vlaneseq
      %v366 = vshrl.u32 %v365, 7
      %v367 = vsub.s32 0, %v366
      %v368 = vrot.slane %v363, %v367
      %v370 = vadd.f32 %v355, %v368
      %v371 = vadd.f32 %v356, %v368
      %v372 = vadd.f32 %v357, %v368
      %v373 = vadd.f32 %v358, %v368
      %v374 = vadd.f32 %v359, %v368
      %v375 = vadd.f32 %v360, %v368
      %v376 = vadd.f32 %v361, %v368
      %v377 = vadd.f32 %v362, %v368
      %v378 = vmax.f32 %v370, 0.0
      %v379 = vmax.f32 %v371, 0.0
      %v380 = vmax.f32 %v372, 0.0
      %v381 = vmax.f32 %v373, 0.0
      %v382 = vmax.f32 %v374, 0.0
      %v383 = vmax.f32 %v375, 0.0
      %v384 = vmax.f32 %v376, 0.0
      %v385 = vmax.f32 %v377, 0.0
      %v386 = vld [vmem:[%s323] sm:$0xf]
      %v387 = vld [vmem:[%s323 + $0x4] sm:$0xf]
      %v388 = vld [vmem:[%s323 + $0x8] sm:$0xf]
      %v389 = vld [vmem:[%s323 + $0xc] sm:$0xf]
      %v390 = vld [vmem:[%s323 + $0x10] sm:$0xf]
      %v391 = vld [vmem:[%s323 + $0x14] sm:$0xf]
      %v392 = vld [vmem:[%s323 + $0x18] sm:$0xf]
      %v393 = vld [vmem:[%s323 + $0x1c] sm:$0xf]
      %v394 = vunpack.c.l.bf16 %v386
      %v395 = vunpack.c.l.bf16 %v387
      %v396 = vunpack.c.l.bf16 %v388
      %v397 = vunpack.c.l.bf16 %v389
      %v398 = vunpack.c.l.bf16 %v390
      %v399 = vunpack.c.l.bf16 %v391
      %v400 = vunpack.c.l.bf16 %v392
      %v401 = vunpack.c.l.bf16 %v393
      %v402 = vmul.f32 %v378, %v394
      %v403 = vmul.f32 %v379, %v395
      %v404 = vmul.f32 %v380, %v396
      %v405 = vmul.f32 %v381, %v397
      %v406 = vmul.f32 %v382, %v398
      %v407 = vmul.f32 %v383, %v399
      %v408 = vmul.f32 %v384, %v400
      %v409 = vmul.f32 %v385, %v401
      %v410 = vpack.c.bf16 %v403, %v402
      %v411 = vpack.c.bf16 %v405, %v404
      %v412 = vpack.c.bf16 %v407, %v406
      %v413 = vpack.c.bf16 %v409, %v408
      %v414 = vld [vmem:[%s4] sm:$0xf]
      %v415 = vld [vmem:[%s4 + $0x4] sm:$0xf]
      %v416 = vld [vmem:[%s4 + $0x8] sm:$0xf]
      %v417 = vld [vmem:[%s4 + $0xc] sm:$0xf]
      %v418 = vld [vmem:[%s4 + $0x10] sm:$0x3]
      %v419 = vld [vmem:[%s5] sm:$0x1]
      %v421 = vlaneseq
      %v422 = vshrl.u32 %v421, 7
      %v423 = vsub.s32 0, %v422
      %v424 = vrot.slane %v419, %v423
      %v431 = vunpack.c.l.b16 %v414
      %v432 = vunpack.c.l.b16 %v415
      %v433 = vunpack.c.l.b16 %v416
      %v434 = vunpack.c.l.b16 %v417
      %v435 = vunpack.c.l.b16 %v418
      %v436 = vpack.c.b16 %v432, %v431
      %v437 = vpack.c.b16 %v434, %v433
      %v438 = vpack.c.b16 %v435, %v435
      %vm441 = vcmask 293888
      %v443 = vsel %vm441, %v410, 0
      %v446 = vsel %vm441, %v411, 0
      %v449 = vsel %vm441, %v412, 0
      %v452 = vsel %vm441, %v413, 0
      %vm454 = vcmask 1041408
      %v456 = vsel %vm454, %v438, 0
      %458 = vmatprep.subr.bf16.mxu0 0
      %459 = vmatpush1.bf16.msra.mxu0 0
      %460 = vmatprep.subr.bf16.mxu0 0
      %461 = vmatpush1.bf16.msra.mxu0 0
      %462 = vmatprep.subr.bf16.mxu0 0
      %463 = vmatpush1.bf16.msra.mxu0 0
      %464 = vmatprep.subr.bf16.mxu0 0
      %465 = vmatpush1.bf16.msra.mxu0 0
      %466 = vmatprep.subr.bf16.mxu0 0
      %467 = vmatpush1.bf16.msra.mxu0 0
      %468 = vmatprep.subr.bf16.mxu0 0
      %469 = vmatpush1.bf16.msra.mxu0 %v456
      %470 = vmatprep.subr.bf16.mxu0 0
      %471 = vmatpush1.bf16.msra.mxu0 %v437
      %472 = vmatprep.subr.bf16.mxu0 0
      %473 = vmatpush1.bf16.msra.mxu0 %v436
      %474 = vmatprep.subr.bf16.mxu0 0
      %475 = vmatpush2.bf16.msra.mxu0 0
      %476 = vmatprep.subr.bf16.mxu0 0
      %477 = vmatpush2.bf16.msra.mxu0 0
      %478 = vmatprep.subr.bf16.mxu0 0
      %479 = vmatpush2.bf16.msra.mxu0 0
      %480 = vmatprep.subr.bf16.mxu0 0
      %481 = vmatpush2.bf16.msra.mxu0 0
      %482 = vmatprep.subr.bf16.mxu0 0
      %483 = vmatpush2.bf16.msra.mxu0 0
      %484 = vmatprep.subr.bf16.mxu0 0
      %485 = vmatpush2.bf16.msra.mxu0 0
      %486 = vmatprep.subr.bf16.mxu0 0
      %487 = vmatpush2.bf16.msra.mxu0 0
      %488 = vmatprep.subr.bf16.mxu0 0
      %489 = vmatpush2.bf16.msra.mxu0 0
      %490 = vmatprep.mubr.bf16.mxu0 0
      %491 = vmatmul.mubr.bf16.gmra.mxu0 %v443
      %v492 = vpop.f32.mrf.mxu0
      %v493 = vadd.f32 %v424, %v492
      %v494 = vpop.f32.mrf.mxu0
      %v495 = vpop.f32.mrf.mxu0
      %v496 = vadd.f32 %v424, %v495
      %v497 = vpop.f32.mrf.mxu0
      %498 = vmatprep.mubr.bf16.mxu0 0
      %499 = vmatmul.mubr.bf16.gmra.mxu0 %v446
      %v500 = vpop.f32.mrf.mxu0
      %v501 = vadd.f32 %v424, %v500
      %v502 = vpop.f32.mrf.mxu0
      %v503 = vpop.f32.mrf.mxu0
      %v504 = vadd.f32 %v424, %v503
      %v505 = vpop.f32.mrf.mxu0
      %506 = vmatprep.mubr.bf16.mxu0 0
      %507 = vmatmul.mubr.bf16.gmra.mxu0 %v449
      %v508 = vpop.f32.mrf.mxu0
      %v509 = vadd.f32 %v424, %v508
      %v510 = vpop.f32.mrf.mxu0
      %v511 = vpop.f32.mrf.mxu0
      %v512 = vadd.f32 %v424, %v511
      %v513 = vpop.f32.mrf.mxu0
      %514 = vmatprep.mubr.bf16.mxu0 0
      %515 = vmatmul.mubr.bf16.gmra.mxu0 %v452
      %v516 = vpop.f32.mrf.mxu0
      %v517 = vadd.f32 %v424, %v516
      %v518 = vpop.f32.mrf.mxu0
      %v519 = vpop.f32.mrf.mxu0
      %v520 = vadd.f32 %v424, %v519
      %v521 = vpop.f32.mrf.mxu0
      %522 = vdwg.mxu0
      %v523 = vld [vmem:[%s6] sm:$0xf]
      %v524 = vld [vmem:[%s6 + $0x4] sm:$0xf]
      %v525 = vld [vmem:[%s6 + $0x8] sm:$0xf]
      %v526 = vld [vmem:[%s6 + $0xc] sm:$0xf]
      %v527 = vld [vmem:[%s6 + $0x10] sm:$0x3]
      %v528 = vld [vmem:[%s7] sm:$0x1]
      %v530 = vlaneseq
      %v531 = vshrl.u32 %v530, 7
      %v532 = vsub.s32 0, %v531
      %v533 = vrot.slane %v528, %v532
      %v543 = vunpack.c.l.b16 %v332
      %v544 = vunpack.c.l.b16 %v333
      %v545 = vunpack.c.l.b16 %v334
      %v546 = vunpack.c.l.b16 %v335
      %v547 = vunpack.c.l.b16 %v336
      %v548 = vunpack.c.l.b16 %v337
      %v549 = vunpack.c.l.b16 %v338
      %v550 = vunpack.c.l.b16 %v339
      %v551 = vpack.c.b16 %v544, %v543
      %v552 = vpack.c.b16 %v546, %v545
      %v553 = vpack.c.b16 %v548, %v547
      %v554 = vpack.c.b16 %v550, %v549
      %v560 = vunpack.c.l.b16 %v523
      %v561 = vunpack.c.l.b16 %v524
      %v562 = vunpack.c.l.b16 %v525
      %v563 = vunpack.c.l.b16 %v526
      %v564 = vunpack.c.l.b16 %v527
      %v565 = vpack.c.b16 %v561, %v560
      %v566 = vpack.c.b16 %v563, %v562
      %v567 = vpack.c.b16 %v564, %v564
      %v571 = vsel %vm441, %v551, 0
      %v574 = vsel %vm441, %v552, 0
      %v577 = vsel %vm441, %v553, 0
      %v580 = vsel %vm441, %v554, 0
      %v583 = vsel %vm454, %v567, 0
      %585 = vmatprep.subr.bf16.mxu0 0
      %586 = vmatpush1.bf16.msra.mxu0 0
      %587 = vmatprep.subr.bf16.mxu0 0
      %588 = vmatpush1.bf16.msra.mxu0 0
      %589 = vmatprep.subr.bf16.mxu0 0
      %590 = vmatpush1.bf16.msra.mxu0 0
      %591 = vmatprep.subr.bf16.mxu0 0
      %592 = vmatpush1.bf16.msra.mxu0 0
      %593 = vmatprep.subr.bf16.mxu0 0
      %594 = vmatpush1.bf16.msra.mxu0 0
      %595 = vmatprep.subr.bf16.mxu0 0
      %596 = vmatpush1.bf16.msra.mxu0 %v583
      %597 = vmatprep.subr.bf16.mxu0 0
      %598 = vmatpush1.bf16.msra.mxu0 %v566
      %599 = vmatprep.subr.bf16.mxu0 0
      %600 = vmatpush1.bf16.msra.mxu0 %v565
      %601 = vmatprep.subr.bf16.mxu0 0
      %602 = vmatpush2.bf16.msra.mxu0 0
      %603 = vmatprep.subr.bf16.mxu0 0
      %604 = vmatpush2.bf16.msra.mxu0 0
      %605 = vmatprep.subr.bf16.mxu0 0
      %606 = vmatpush2.bf16.msra.mxu0 0
      %607 = vmatprep.subr.bf16.mxu0 0
      %608 = vmatpush2.bf16.msra.mxu0 0
      %609 = vmatprep.subr.bf16.mxu0 0
      %610 = vmatpush2.bf16.msra.mxu0 0
      %611 = vmatprep.subr.bf16.mxu0 0
      %612 = vmatpush2.bf16.msra.mxu0 0
      %613 = vmatprep.subr.bf16.mxu0 0
      %614 = vmatpush2.bf16.msra.mxu0 0
      %615 = vmatprep.subr.bf16.mxu0 0
      %616 = vmatpush2.bf16.msra.mxu0 0
      %617 = vmatprep.mubr.bf16.mxu0 0
      %618 = vmatmul.mubr.bf16.gmra.mxu0 %v571
      %v619 = vpop.f32.mrf.mxu0
      %v620 = vadd.f32 %v533, %v619
      %v621 = vpop.f32.mrf.mxu0
      %v622 = vpop.f32.mrf.mxu0
      %v623 = vadd.f32 %v533, %v622
      %v624 = vpop.f32.mrf.mxu0
      %625 = vmatprep.mubr.bf16.mxu0 0
      %626 = vmatmul.mubr.bf16.gmra.mxu0 %v574
      %v627 = vpop.f32.mrf.mxu0
      %v628 = vadd.f32 %v533, %v627
      %v629 = vpop.f32.mrf.mxu0
      %v630 = vpop.f32.mrf.mxu0
      %v631 = vadd.f32 %v533, %v630
      %v632 = vpop.f32.mrf.mxu0
      %633 = vmatprep.mubr.bf16.mxu0 0
      %634 = vmatmul.mubr.bf16.gmra.mxu0 %v577
      %v635 = vpop.f32.mrf.mxu0
      %v636 = vadd.f32 %v533, %v635
      %v637 = vpop.f32.mrf.mxu0
      %v638 = vpop.f32.mrf.mxu0
      %v639 = vadd.f32 %v533, %v638
      %v640 = vpop.f32.mrf.mxu0
      %641 = vmatprep.mubr.bf16.mxu0 0
      %642 = vmatmul.mubr.bf16.gmra.mxu0 %v580
      %v643 = vpop.f32.mrf.mxu0
      %v644 = vadd.f32 %v533, %v643
      %v645 = vpop.f32.mrf.mxu0
      %v646 = vpop.f32.mrf.mxu0
      %v647 = vadd.f32 %v533, %v646
      %v648 = vpop.f32.mrf.mxu0
      %649 = vdwg.mxu0
      %658 = vrot.lane.b32.xlu0 %v620, 8
      %v659 = vpop.permute.xlu0 %658
      %660 = vrot.lane.b32.xlu0 %v623, 8
      %v661 = vpop.permute.xlu0 %660
      %662 = vrot.lane.b32.xlu0 %v628, 8
      %v663 = vpop.permute.xlu0 %662
      %664 = vrot.lane.b32.xlu0 %v631, 8
      %v665 = vpop.permute.xlu0 %664
      %666 = vrot.lane.b32.xlu0 %v636, 8
      %v667 = vpop.permute.xlu0 %666
      %668 = vrot.lane.b32.xlu0 %v639, 8
      %v669 = vpop.permute.xlu0 %668
      %670 = vrot.lane.b32.xlu0 %v644, 8
      %v671 = vpop.permute.xlu0 %670
      %672 = vrot.lane.b32.xlu0 %v647, 8
      %v673 = vpop.permute.xlu0 %672
      %vm682 = vcmask 64512
      %v683 = vsel %vm682, %v493, %v659
      %v684 = vsel %vm682, %v496, %v661
      %v685 = vsel %vm682, %v501, %v663
      %v686 = vsel %vm682, %v504, %v665
      %v687 = vsel %vm682, %v509, %v667
      %v688 = vsel %vm682, %v512, %v669
      %v689 = vsel %vm682, %v517, %v671
      %v690 = vsel %vm682, %v520, %v673
      %vm691 = vcmask 130048
      %692 = vst.msk [vmem:[%s329] sm:$0xff] %vm691, %v683
      %693 = vst.msk [vmem:[%s329 + $0x8] sm:$0xff] %vm691, %v684
      %694 = vst.msk [vmem:[%s329 + $0x10] sm:$0xff] %vm691, %v685
      %695 = vst.msk [vmem:[%s329 + $0x18] sm:$0xff] %vm691, %v686
      %696 = vst.msk [vmem:[%s329 + $0x20] sm:$0xff] %vm691, %v687
      %697 = vst.msk [vmem:[%s329 + $0x28] sm:$0xff] %vm691, %v688
      %698 = vst.msk [vmem:[%s329 + $0x30] sm:$0xff] %vm691, %v689
      %699 = vst.msk [vmem:[%s329 + $0x38] sm:$0xff] %vm691, %v690
      %s700 = smul.u32 8, %s19
      %p701 = scmp.lt.s32.totalorder %s700, 15
      %s702 = scalar_select %p701, %s700, 15
      %s703 = smul.addr %s702, 8
      %s704 = scalar_lea.vmem %s8, %s703
      // Predicated region
      $region53: #{_lambda_.2} parent=51 // pred_check
        %p705 = pneg %p215
      $region54: #{_lambda_.2} parent=51 // pred_check_branch
        %707 = sbr.rel (%p705) target = $region56
      $region55: #{_lambda_.2} parent=51 // pred_region
        %s708 = smul.u32 8, %s19
      $region56: #{_lambda_.2} parent=51 // pred_fallthru
        _
    $region52: #{_lambda_.2} parent=5 // pred_fallthru
      _
    %p709 = scmp.le.s32.totalorder 2, %s14
    // Predicated region
    $region57: #{_lambda_.2} parent=5 // pred_check
      %p710 = pneg %p709
    $region58: #{_lambda_.2} parent=5 // pred_check_branch
      %712 = sbr.rel (%p710) target = $region60
    $region59: #{_lambda_.2} parent=5 // pred_region
      %s713 = ssub.s32 %s14, 2
      // Predicated region
      $region61: #{_lambda_.2} parent=59 // pred_check
        %p714 = pneg %p221
      $region62: #{_lambda_.2} parent=59 // pred_check_branch
        %716 = sbr.rel (%p714) target = $region64
      $region63: #{_lambda_.2} parent=59 // pred_region
        %s717 = smul.u32 8, %s20
        %p718 = scmp.lt.s32.totalorder %s717, 15
        %s719 = scalar_select %p718, %s717, 15
        %s720 = smul.addr %s719, 8
        %s721 = scalar_lea.vmem %s8, %s720
      $region64: #{_lambda_.2} parent=59 // pred_fallthru
        _
    $region60: #{_lambda_.2} parent=5 // pred_fallthru
      _
  $region6: #{_lambda_.2} parent=0 // loop_footer
    %s18 = sadd.s32 1, %s14
  $region7: #{_lambda_.2} parent=0 // loop_footer_branch
    %13 = sbr.rel target = $region3
  $region8: #{_lambda_.2} parent=0 // loop_exit
    _

// kernel: _lambda_.3
$region0: #{_lambda_.3}
  #allocation0 [shape = 'u32[]', space=smem, size = 0x4, offset = 0x4, fixed_abs, tag = 'smem constant byte address 0x4 - core index']
  #allocation1 [shape = 'u32[144,128]{1,0:T(1,128)}', space=vmem, size = 0x12000, scoped, tag = 'internal scratch']
  %s0 = inlined_call_operand.vmem [shape: bf16[128,72], index: 0, kind: input, shape index: {}]
  %s1 = inlined_call_operand.vmem [shape: f32[128,8], index: 1, kind: input, shape index: {}]
  %s2 = inlined_call_operand.vmem [shape: bf16[72,8], index: 2, kind: input, shape index: {}]
  %s3 = inlined_call_operand.vmem [shape: f32[1,8], index: 3, kind: input, shape index: {}]
  %s4 = inlined_call_operand.vmem [shape: f32[1,8], index: 4, kind: input, shape index: {}]
  %s5 = inlined_call_operand.vmem [shape: f32[1,8], index: 5, kind: input, shape index: {}]
  %s6 = inlined_call_operand.vmem [shape: f32[128,8], index: 6, kind: output, shape index: {}]
  %s7 = sld [smem:[#allocation0]]
  $region57: #{_lambda_.3} parent=0
    _
  %s9 = ssub.s32 1, %s7
  %s10 = scalar_select 0, %s9, %s7
  loop: start=0, step=1, limit=4
  $region2: #{_lambda_.3} parent=0 // loop_pre_header
    _
  $region3: #{_lambda_.3} parent=0 // loop_header
    %s12 = sphi 0, %s16
    %p13 = scmp.ge.s32.totalorder %s12, 4
    %s22 = sphi 0, %s24
    %s25 = sphi 0, %s22
    %s26 = sphi 0, %s25
    %s42 = sphi 0, %s26
    %s48 = sphi 0, %s50
    %s51 = sphi 0, %s48
    %s52 = sphi 0, %s51
    %s68 = sphi 0, %s52
    %s72 = sphi 0, %s72
    %s74 = sphi 0, %s72
    %s75 = sphi 0, %s74
    %s89 = sphi 0, %s75
    %s93 = sphi 0, %s93
    %s95 = sphi 0, %s93
    %s96 = sphi 0, %s95
    %s110 = sphi 0, %s96
    %s114 = sphi 0, %s114
    %s116 = sphi 0, %s114
    %s117 = sphi 0, %s116
    %s131 = sphi 0, %s117
    %s135 = sphi 0, %s135
    %s137 = sphi 0, %s135
    %s138 = sphi 0, %s137
    %s152 = sphi 0, %s138
    %s158 = sphi 0, %s160
    %s161 = sphi 0, %s158
    %s162 = sphi 0, %s161
    %s178 = sphi 0, %s162
  $region4: #{_lambda_.3} parent=0 // loop_header_branch
    %15 = sbr.rel (%p13) target = $region8
  $region5: #{_lambda_.3} parent=0 // loop_body
    %s17 = ssub.s32 %s12, 1
    %s18 = ssub.s32 %s12, 2
    %s19 = sadd.s32 %s12, 1
    %s20 = ssub.s32 %s12, %s19
    %p21 = scmp.eq.s32.totalorder %s20, 0
    %s23 = sadd.s32 %s22, 1
    %s24 = scalar_select %p21, %s22, %s23
    %p27 = pneg %p21
    %p28 = scmp.eq.s32.totalorder %s12, 1
    %p29 = por %p27, %p28
    %p30 = scmp.ne.s32.totalorder %s22, %s25
    %p31 = scmp.eq.s32.totalorder %s12, 0
    %p32 = por %p30, %p31
    %p33 = scmp.ne.s32.totalorder %s22, %s25
    %p34 = scmp.eq.s32.totalorder %s17, 1
    %p35 = por %p33, %p34
    %p36 = scmp.ne.s32.totalorder %s25, %s26
    %p37 = scmp.eq.s32.totalorder %s17, 0
    %p38 = por %p36, %p37
    %p39 = scmp.ne.s32.totalorder %s25, %s26
    %p40 = scmp.eq.s32.totalorder %s18, 1
    %p41 = por %p39, %p40
    %p43 = scmp.ne.s32.totalorder %s26, %s42
    %p44 = scmp.eq.s32.totalorder %s18, 0
    %p45 = por %p43, %p44
    %s46 = ssub.s32 %s12, %s19
    %p47 = scmp.eq.s32.totalorder %s46, 0
    %s49 = sadd.s32 %s48, 1
    %s50 = scalar_select %p47, %s48, %s49
    %p53 = pneg %p47
    %p54 = scmp.eq.s32.totalorder %s12, 1
    %p55 = por %p53, %p54
    %p56 = scmp.ne.s32.totalorder %s48, %s51
    %p57 = scmp.eq.s32.totalorder %s12, 0
    %p58 = por %p56, %p57
    %p59 = scmp.ne.s32.totalorder %s48, %s51
    %p60 = scmp.eq.s32.totalorder %s17, 1
    %p61 = por %p59, %p60
    %p62 = scmp.ne.s32.totalorder %s51, %s52
    %p63 = scmp.eq.s32.totalorder %s17, 0
    %p64 = por %p62, %p63
    %p65 = scmp.ne.s32.totalorder %s51, %s52
    %p66 = scmp.eq.s32.totalorder %s18, 1
    %p67 = por %p65, %p66
    %p69 = scmp.ne.s32.totalorder %s52, %s68
    %p70 = scmp.eq.s32.totalorder %s18, 0
    %p71 = por %p69, %p70
    %s73 = sadd.s32 %s72, 1
    %p76 = scmp.eq.s32.totalorder %s12, 1
    %p77 = scmp.ne.s32.totalorder %s72, %s74
    %p78 = scmp.eq.s32.totalorder %s12, 0
    %p79 = por %p77, %p78
    %p80 = scmp.ne.s32.totalorder %s72, %s74
    %p81 = scmp.eq.s32.totalorder %s17, 1
    %p82 = por %p80, %p81
    %p83 = scmp.ne.s32.totalorder %s74, %s75
    %p84 = scmp.eq.s32.totalorder %s17, 0
    %p85 = por %p83, %p84
    %p86 = scmp.ne.s32.totalorder %s74, %s75
    %p87 = scmp.eq.s32.totalorder %s18, 1
    %p88 = por %p86, %p87
    %p90 = scmp.ne.s32.totalorder %s75, %s89
    %p91 = scmp.eq.s32.totalorder %s18, 0
    %p92 = por %p90, %p91
    %s94 = sadd.s32 %s93, 1
    %p97 = scmp.eq.s32.totalorder %s12, 1
    %p98 = scmp.ne.s32.totalorder %s93, %s95
    %p99 = scmp.eq.s32.totalorder %s12, 0
    %p100 = por %p98, %p99
    %p101 = scmp.ne.s32.totalorder %s93, %s95
    %p102 = scmp.eq.s32.totalorder %s17, 1
    %p103 = por %p101, %p102
    %p104 = scmp.ne.s32.totalorder %s95, %s96
    %p105 = scmp.eq.s32.totalorder %s17, 0
    %p106 = por %p104, %p105
    %p107 = scmp.ne.s32.totalorder %s95, %s96
    %p108 = scmp.eq.s32.totalorder %s18, 1
    %p109 = por %p107, %p108
    %p111 = scmp.ne.s32.totalorder %s96, %s110
    %p112 = scmp.eq.s32.totalorder %s18, 0
    %p113 = por %p111, %p112
    %s115 = sadd.s32 %s114, 1
    %p118 = scmp.eq.s32.totalorder %s12, 1
    %p119 = scmp.ne.s32.totalorder %s114, %s116
    %p120 = scmp.eq.s32.totalorder %s12, 0
    %p121 = por %p119, %p120
    %p122 = scmp.ne.s32.totalorder %s114, %s116
    %p123 = scmp.eq.s32.totalorder %s17, 1
    %p124 = por %p122, %p123
    %p125 = scmp.ne.s32.totalorder %s116, %s117
    %p126 = scmp.eq.s32.totalorder %s17, 0
    %p127 = por %p125, %p126
    %p128 = scmp.ne.s32.totalorder %s116, %s117
    %p129 = scmp.eq.s32.totalorder %s18, 1
    %p130 = por %p128, %p129
    %p132 = scmp.ne.s32.totalorder %s117, %s131
    %p133 = scmp.eq.s32.totalorder %s18, 0
    %p134 = por %p132, %p133
    %s136 = sadd.s32 %s135, 1
    %p139 = scmp.eq.s32.totalorder %s12, 1
    %p140 = scmp.ne.s32.totalorder %s135, %s137
    %p141 = scmp.eq.s32.totalorder %s12, 0
    %p142 = por %p140, %p141
    %p143 = scmp.ne.s32.totalorder %s135, %s137
    %p144 = scmp.eq.s32.totalorder %s17, 1
    %p145 = por %p143, %p144
    %p146 = scmp.ne.s32.totalorder %s137, %s138
    %p147 = scmp.eq.s32.totalorder %s17, 0
    %p148 = por %p146, %p147
    %p149 = scmp.ne.s32.totalorder %s137, %s138
    %p150 = scmp.eq.s32.totalorder %s18, 1
    %p151 = por %p149, %p150
    %p153 = scmp.ne.s32.totalorder %s138, %s152
    %p154 = scmp.eq.s32.totalorder %s18, 0
    %p155 = por %p153, %p154
    %s156 = ssub.s32 %s12, %s19
    %p157 = scmp.eq.s32.totalorder %s156, 0
    %s159 = sadd.s32 %s158, 1
    %s160 = scalar_select %p157, %s158, %s159
    %p163 = pneg %p157
    %p164 = scmp.eq.s32.totalorder %s12, 1
    %p165 = por %p163, %p164
    %p166 = scmp.ne.s32.totalorder %s158, %s161
    %p167 = scmp.eq.s32.totalorder %s12, 0
    %p168 = por %p166, %p167
    %p169 = scmp.ne.s32.totalorder %s158, %s161
    %p170 = scmp.eq.s32.totalorder %s17, 1
    %p171 = por %p169, %p170
    %p172 = scmp.ne.s32.totalorder %s161, %s162
    %p173 = scmp.eq.s32.totalorder %s17, 0
    %p174 = por %p172, %p173
    %p175 = scmp.ne.s32.totalorder %s161, %s162
    %p176 = scmp.eq.s32.totalorder %s18, 1
    %p177 = por %p175, %p176
    %p179 = scmp.ne.s32.totalorder %s162, %s178
    %p180 = scmp.eq.s32.totalorder %s18, 0
    %p181 = por %p179, %p180
    %p182 = scmp.le.s32.totalorder 1, %s12
    %p183 = scmp.lt.s32.totalorder %s12, 3
    %p184 = pnand %p182, %p183
    %p185 = pneg %p184
    // Predicated region
    $region9: #{_lambda_.3} parent=5 // pred_check
      _
    $region10: #{_lambda_.3} parent=5 // pred_check_branch
      %187 = sbr.rel (%p184) target = $region12
    $region11: #{_lambda_.3} parent=5 // pred_region
      %s188 = ssub.s32 %s12, 1
      // Predicated region
      $region13: #{_lambda_.3} parent=11 // pred_check
        %p189 = pneg %p85
      $region14: #{_lambda_.3} parent=11 // pred_check_branch
        %191 = sbr.rel (%p189) target = $region16
      $region15: #{_lambda_.3} parent=11 // pred_region
        _
      $region16: #{_lambda_.3} parent=11 // pred_fallthru
        _
      // Predicated region
      $region17: #{_lambda_.3} parent=11 // pred_check
        %p192 = pneg %p106
      $region18: #{_lambda_.3} parent=11 // pred_check_branch
        %194 = sbr.rel (%p192) target = $region20
      $region19: #{_lambda_.3} parent=11 // pred_region
        _
      $region20: #{_lambda_.3} parent=11 // pred_fallthru
        _
      // Predicated region
      $region21: #{_lambda_.3} parent=11 // pred_check
        %p195 = pneg %p127
      $region22: #{_lambda_.3} parent=11 // pred_check_branch
        %197 = sbr.rel (%p195) target = $region24
      $region23: #{_lambda_.3} parent=11 // pred_region
        _
      $region24: #{_lambda_.3} parent=11 // pred_fallthru
        _
      // Predicated region
      $region25: #{_lambda_.3} parent=11 // pred_check
        %p198 = pneg %p148
      $region26: #{_lambda_.3} parent=11 // pred_check_branch
        %200 = sbr.rel (%p198) target = $region28
      $region27: #{_lambda_.3} parent=11 // pred_region
        _
      $region28: #{_lambda_.3} parent=11 // pred_fallthru
        _
    $region12: #{_lambda_.3} parent=5 // pred_fallthru
      _
    %p201 = scmp.lt.s32.totalorder %s12, 2
    // Predicated region
    $region29: #{_lambda_.3} parent=5 // pred_check
      %p202 = pneg %p201
    $region30: #{_lambda_.3} parent=5 // pred_check_branch
      %204 = sbr.rel (%p202) target = $region32
    $region31: #{_lambda_.3} parent=5 // pred_region
      // Predicated region
      $region33: #{_lambda_.3} parent=31 // pred_check
        %p205 = pneg %p32
      $region34: #{_lambda_.3} parent=31 // pred_check_branch
        %207 = sbr.rel (%p205) target = $region36
      $region35: #{_lambda_.3} parent=31 // pred_region
        %s208 = smul.u32 8, %s12
        %p209 = scmp.lt.s32.totalorder %s208, 15
        %s210 = scalar_select %p209, %s208, 15
        %s211 = smul.addr %s210, 4
        %s212 = scalar_lea.vmem %s0, %s211
        %s213 = smul.u32 8, %s12
      $region36: #{_lambda_.3} parent=31 // pred_fallthru
        _
      // Predicated region
      $region37: #{_lambda_.3} parent=31 // pred_check
        %p214 = pneg %p58
      $region38: #{_lambda_.3} parent=31 // pred_check_branch
        %216 = sbr.rel (%p214) target = $region40
      $region39: #{_lambda_.3} parent=31 // pred_region
        %s217 = smul.u32 8, %s12
        %p218 = scmp.lt.s32.totalorder %s217, 15
        %s219 = scalar_select %p218, %s217, 15
        %s220 = smul.addr %s219, 8
        %s221 = scalar_lea.vmem %s1, %s220
        %s222 = smul.u32 8, %s12
      $region40: #{_lambda_.3} parent=31 // pred_fallthru
        _
    $region32: #{_lambda_.3} parent=5 // pred_fallthru
      _
    %p223 = scmp.le.s32.totalorder 1, %s12
    %p224 = scmp.lt.s32.totalorder %s12, 3
    %p225 = pnand %p223, %p224
    %p226 = pneg %p225
    // Predicated region
    $region41: #{_lambda_.3} parent=5 // pred_check
      _
    $region42: #{_lambda_.3} parent=5 // pred_check_branch
      %228 = sbr.rel (%p225) target = $region44
    $region43: #{_lambda_.3} parent=5 // pred_region
      %s229 = ssub.s32 %s12, 1
      %s230 = smul.u32 8, %s17
      %p231 = scmp.lt.s32.totalorder %s230, 15
      %s232 = scalar_select %p231, %s230, 15
      %s233 = smul.addr %s232, 4
      %s234 = scalar_lea.vmem %s0, %s233
      %p235 = pneg %p38
      %p236 = pneg %p35
      %s237 = smul.u32 8, %s17
      %p238 = scmp.lt.s32.totalorder %s237, 15
      %s239 = scalar_select %p238, %s237, 15
      %s240 = smul.addr %s239, 8
      %s241 = scalar_lea.vmem %s1, %s240
      %p242 = pneg %p64
      %p243 = pneg %p61
      %p244 = pneg %p85
      %p245 = pneg %p82
      %p246 = pneg %p106
      %p247 = pneg %p103
      %p248 = pneg %p127
      %p249 = pneg %p124
      %p250 = pneg %p148
      %p251 = pneg %p145
      %p252 = pneg %p174
      %p253 = pneg %p171
      %s254 = smul.u32 8, %s17
      %p255 = scmp.lt.s32.totalorder %s254, 15
      %s256 = scalar_select %p255, %s254, 15
      %s257 = smul.addr %s256, 8
      %s258 = scalar_lea.vmem %s6, %s257
      %s259 = smul.u32 8, %s17
      %p260 = scmp.lt.s32.totalorder %s259, 15
      %s261 = scalar_select %p260, %s259, 15
      %s262 = smul.addr %s261, 4
      %s263 = scalar_lea.vmem %s0, %s262
      %s264 = smul.u32 8, %s17
      %s265 = smul.u32 8, %s17
      %p266 = scmp.lt.s32.totalorder %s265, 15
      %s267 = scalar_select %p266, %s265, 15
      %s268 = smul.addr %s267, 8
      %s269 = scalar_lea.vmem %s1, %s268
      %s270 = smul.u32 8, %s17
      %s271 = smul.u32 8, %s17
      %p272 = scmp.lt.s32.totalorder %s271, 15
      %s273 = scalar_select %p272, %s271, 15
      %s274 = smul.addr %s273, 8
      %s275 = scalar_lea.vmem %s6, %s274
      %s276 = smul.u32 8, %s17
      %v278 = vld [vmem:[%s263] sm:$0xf]
      %v279 = vld [vmem:[%s263 + $0x4] sm:$0xf]
      %v280 = vld [vmem:[%s263 + $0x8] sm:$0xf]
      %v281 = vld [vmem:[%s263 + $0xc] sm:$0xf]
      %v282 = vld [vmem:[%s263 + $0x10] sm:$0xf]
      %v283 = vld [vmem:[%s263 + $0x14] sm:$0xf]
      %v284 = vld [vmem:[%s263 + $0x18] sm:$0xf]
      %v285 = vld [vmem:[%s263 + $0x1c] sm:$0xf]
      %v286 = vunpack.c.l.bf16 %v278
      %v287 = vunpack.c.l.bf16 %v279
      %v288 = vunpack.c.l.bf16 %v280
      %v289 = vunpack.c.l.bf16 %v281
      %v290 = vunpack.c.l.bf16 %v282
      %v291 = vunpack.c.l.bf16 %v283
      %v292 = vunpack.c.l.bf16 %v284
      %v293 = vunpack.c.l.bf16 %v285
      %v294 = vmax.f32 %v286, 0.0
      %v295 = vmax.f32 %v287, 0.0
      %v296 = vmax.f32 %v288, 0.0
      %v297 = vmax.f32 %v289, 0.0
      %v298 = vmax.f32 %v290, 0.0
      %v299 = vmax.f32 %v291, 0.0
      %v300 = vmax.f32 %v292, 0.0
      %v301 = vmax.f32 %v293, 0.0
      %v302 = vpack.c.bf16 %v295, %v294
      %v303 = vpack.c.bf16 %v297, %v296
      %v304 = vpack.c.bf16 %v299, %v298
      %v305 = vpack.c.bf16 %v301, %v300
      %v306 = vld [vmem:[%s2] sm:$0xf]
      %v307 = vld [vmem:[%s2 + $0x4] sm:$0xf]
      %v308 = vld [vmem:[%s2 + $0x8] sm:$0xf]
      %v309 = vld [vmem:[%s2 + $0xc] sm:$0xf]
      %v310 = vld [vmem:[%s2 + $0x10] sm:$0xf]
      %v311 = vld [vmem:[%s2 + $0x14] sm:$0xf]
      %v312 = vld [vmem:[%s2 + $0x18] sm:$0xf]
      %v313 = vld [vmem:[%s2 + $0x1c] sm:$0xf]
      %v314 = vld [vmem:[%s2 + $0x20] sm:$0xf]
      %v315 = vld [vmem:[%s3] sm:$0x1]
      %v317 = vlaneseq
      %v318 = vshrl.u32 %v317, 7
      %v319 = vsub.s32 0, %v318
      %v320 = vrot.slane %v315, %v319
      %v331 = vunpack.c.l.b16 %v306
      %v332 = vunpack.c.l.b16 %v307
      %v333 = vunpack.c.l.b16 %v308
      %v334 = vunpack.c.l.b16 %v309
      %v335 = vunpack.c.l.b16 %v310
      %v336 = vunpack.c.l.b16 %v311
      %v337 = vunpack.c.l.b16 %v312
      %v338 = vunpack.c.l.b16 %v313
      %v339 = vunpack.c.l.b16 %v314
      %v340 = vpack.c.b16 %v332, %v331
      %v341 = vpack.c.b16 %v334, %v333
      %v342 = vpack.c.b16 %v336, %v335
      %v343 = vpack.c.b16 %v338, %v337
      %v344 = vpack.c.b16 %v339, %v339
      %vm349 = vcmask 588800
      %v351 = vsel %vm349, %v302, 0
      %v354 = vsel %vm349, %v303, 0
      %v357 = vsel %vm349, %v304, 0
      %v360 = vsel %vm349, %v305, 0
      %vm362 = vcmask 1043456
      %v364 = vsel %vm362, %v344, 0
      %366 = vmatprep.subr.bf16.mxu0 0
      %367 = vmatpush1.bf16.msra.mxu0 0
      %368 = vmatprep.subr.bf16.mxu0 0
      %369 = vmatpush1.bf16.msra.mxu0 0
      %370 = vmatprep.subr.bf16.mxu0 0
      %371 = vmatpush1.bf16.msra.mxu0 0
      %372 = vmatprep.subr.bf16.mxu0 0
      %373 = vmatpush1.bf16.msra.mxu0 %v364
      %374 = vmatprep.subr.bf16.mxu0 0
      %375 = vmatpush1.bf16.msra.mxu0 %v343
      %376 = vmatprep.subr.bf16.mxu0 0
      %377 = vmatpush1.bf16.msra.mxu0 %v342
      %378 = vmatprep.subr.bf16.mxu0 0
      %379 = vmatpush1.bf16.msra.mxu0 %v341
      %380 = vmatprep.subr.bf16.mxu0 0
      %381 = vmatpush1.bf16.msra.mxu0 %v340
      %382 = vmatprep.subr.bf16.mxu0 0
      %383 = vmatpush2.bf16.msra.mxu0 0
      %384 = vmatprep.subr.bf16.mxu0 0
      %385 = vmatpush2.bf16.msra.mxu0 0
      %386 = vmatprep.subr.bf16.mxu0 0
      %387 = vmatpush2.bf16.msra.mxu0 0
      %388 = vmatprep.subr.bf16.mxu0 0
      %389 = vmatpush2.bf16.msra.mxu0 0
      %390 = vmatprep.subr.bf16.mxu0 0
      %391 = vmatpush2.bf16.msra.mxu0 0
      %392 = vmatprep.subr.bf16.mxu0 0
      %393 = vmatpush2.bf16.msra.mxu0 0
      %394 = vmatprep.subr.bf16.mxu0 0
      %395 = vmatpush2.bf16.msra.mxu0 0
      %396 = vmatprep.subr.bf16.mxu0 0
      %397 = vmatpush2.bf16.msra.mxu0 0
      %398 = vmatprep.mubr.bf16.mxu0 0
      %399 = vmatmul.mubr.bf16.gmra.mxu0 %v351
      %v400 = vpop.f32.mrf.mxu0
      %v401 = vadd.f32 %v320, %v400
      %v402 = vpop.f32.mrf.mxu0
      %v403 = vpop.f32.mrf.mxu0
      %v404 = vadd.f32 %v320, %v403
      %v405 = vpop.f32.mrf.mxu0
      %406 = vmatprep.mubr.bf16.mxu0 0
      %407 = vmatmul.mubr.bf16.gmra.mxu0 %v354
      %v408 = vpop.f32.mrf.mxu0
      %v409 = vadd.f32 %v320, %v408
      %v410 = vpop.f32.mrf.mxu0
      %v411 = vpop.f32.mrf.mxu0
      %v412 = vadd.f32 %v320, %v411
      %v413 = vpop.f32.mrf.mxu0
      %414 = vmatprep.mubr.bf16.mxu0 0
      %415 = vmatmul.mubr.bf16.gmra.mxu0 %v357
      %v416 = vpop.f32.mrf.mxu0
      %v417 = vadd.f32 %v320, %v416
      %v418 = vpop.f32.mrf.mxu0
      %v419 = vpop.f32.mrf.mxu0
      %v420 = vadd.f32 %v320, %v419
      %v421 = vpop.f32.mrf.mxu0
      %422 = vmatprep.mubr.bf16.mxu0 0
      %423 = vmatmul.mubr.bf16.gmra.mxu0 %v360
      %v424 = vpop.f32.mrf.mxu0
      %v425 = vadd.f32 %v320, %v424
      %v426 = vpop.f32.mrf.mxu0
      %v427 = vpop.f32.mrf.mxu0
      %v428 = vadd.f32 %v320, %v427
      %v429 = vpop.f32.mrf.mxu0
      %430 = vdwg.mxu0
      %v431 = vld [vmem:[%s269] sm:$0xff]
      %v432 = vld [vmem:[%s269 + $0x8] sm:$0xff]
      %v433 = vld [vmem:[%s269 + $0x10] sm:$0xff]
      %v434 = vld [vmem:[%s269 + $0x18] sm:$0xff]
      %v435 = vld [vmem:[%s269 + $0x20] sm:$0xff]
      %v436 = vld [vmem:[%s269 + $0x28] sm:$0xff]
      %v437 = vld [vmem:[%s269 + $0x30] sm:$0xff]
      %v438 = vld [vmem:[%s269 + $0x38] sm:$0xff]
      %v439 = vld [vmem:[%s4] sm:$0x1]
      %v441 = vlaneseq
      %v442 = vshrl.u32 %v441, 7
      %v443 = vsub.s32 0, %v442
      %v444 = vrot.slane %v439, %v443
      %v446 = vmul.f32 %v431, %v444
      %v447 = vmul.f32 %v432, %v444
      %v448 = vmul.f32 %v433, %v444
      %v449 = vmul.f32 %v434, %v444
      %v450 = vmul.f32 %v435, %v444
      %v451 = vmul.f32 %v436, %v444
      %v452 = vmul.f32 %v437, %v444
      %v453 = vmul.f32 %v438, %v444
      %v454 = vld [vmem:[%s5] sm:$0x1]
      %v456 = vlaneseq
      %v457 = vshrl.u32 %v456, 7
      %v458 = vsub.s32 0, %v457
      %v459 = vrot.slane %v454, %v458
      %v461 = vadd.f32 %v446, %v459
      %v462 = vadd.f32 %v447, %v459
      %v463 = vadd.f32 %v448, %v459
      %v464 = vadd.f32 %v449, %v459
      %v465 = vadd.f32 %v450, %v459
      %v466 = vadd.f32 %v451, %v459
      %v467 = vadd.f32 %v452, %v459
      %v468 = vadd.f32 %v453, %v459
      %v469 = vmax.f32 %v461, 0.0
      %v470 = vmax.f32 %v462, 0.0
      %v471 = vmax.f32 %v463, 0.0
      %v472 = vmax.f32 %v464, 0.0
      %v473 = vmax.f32 %v465, 0.0
      %v474 = vmax.f32 %v466, 0.0
      %v475 = vmax.f32 %v467, 0.0
      %v476 = vmax.f32 %v468, 0.0
      %v477 = vadd.f32 %v401, %v469
      %v478 = vadd.f32 %v404, %v470
      %v479 = vadd.f32 %v409, %v471
      %v480 = vadd.f32 %v412, %v472
      %v481 = vadd.f32 %v417, %v473
      %v482 = vadd.f32 %v420, %v474
      %v483 = vadd.f32 %v425, %v475
      %v484 = vadd.f32 %v428, %v476
      %vm485 = vcmask 64512
      %486 = vst.msk [vmem:[%s275] sm:$0xff] %vm485, %v477
      %487 = vst.msk [vmem:[%s275 + $0x8] sm:$0xff] %vm485, %v478
      %488 = vst.msk [vmem:[%s275 + $0x10] sm:$0xff] %vm485, %v479
      %489 = vst.msk [vmem:[%s275 + $0x18] sm:$0xff] %vm485, %v480
      %490 = vst.msk [vmem:[%s275 + $0x20] sm:$0xff] %vm485, %v481
      %491 = vst.msk [vmem:[%s275 + $0x28] sm:$0xff] %vm485, %v482
      %492 = vst.msk [vmem:[%s275 + $0x30] sm:$0xff] %vm485, %v483
      %493 = vst.msk [vmem:[%s275 + $0x38] sm:$0xff] %vm485, %v484
      %s494 = smul.u32 8, %s17
      %p495 = scmp.lt.s32.totalorder %s494, 15
      %s496 = scalar_select %p495, %s494, 15
      %s497 = smul.addr %s496, 8
      %s498 = scalar_lea.vmem %s6, %s497
      // Predicated region
      $region45: #{_lambda_.3} parent=43 // pred_check
        %p499 = pneg %p171
      $region46: #{_lambda_.3} parent=43 // pred_check_branch
        %501 = sbr.rel (%p499) target = $region48
      $region47: #{_lambda_.3} parent=43 // pred_region
        %s502 = smul.u32 8, %s17
      $region48: #{_lambda_.3} parent=43 // pred_fallthru
        _
    $region44: #{_lambda_.3} parent=5 // pred_fallthru
      _
    %p503 = scmp.le.s32.totalorder 2, %s12
    // Predicated region
    $region49: #{_lambda_.3} parent=5 // pred_check
      %p504 = pneg %p503
    $region50: #{_lambda_.3} parent=5 // pred_check_branch
      %506 = sbr.rel (%p504) target = $region52
    $region51: #{_lambda_.3} parent=5 // pred_region
      %s507 = ssub.s32 %s12, 2
      // Predicated region
      $region53: #{_lambda_.3} parent=51 // pred_check
        %p508 = pneg %p177
      $region54: #{_lambda_.3} parent=51 // pred_check_branch
        %510 = sbr.rel (%p508) target = $region56
      $region55: #{_lambda_.3} parent=51 // pred_region
        %s511 = smul.u32 8, %s18
        %p512 = scmp.lt.s32.totalorder %s511, 15
        %s513 = scalar_select %p512, %s511, 15
        %s514 = smul.addr %s513, 8
        %s515 = scalar_lea.vmem %s6, %s514
      $region56: #{_lambda_.3} parent=51 // pred_fallthru
        _
    $region52: #{_lambda_.3} parent=5 // pred_fallthru
      _
  $region6: #{_lambda_.3} parent=0 // loop_footer
    %s16 = sadd.s32 1, %s12
  $region7: #{_lambda_.3} parent=0 // loop_footer_branch
    %11 = sbr.rel target = $region3
  $region8: #{_lambda_.3} parent=0 // loop_exit
    _

</llo_original>
